<compile_context>
chip_gen: v6e
topology: v6e:2x2x1
jax: 0.10.0
libtpu: 0.0.40
codegen_flags: <defaults>
</compile_context>

<pallas_src>
import jax
import jax.numpy as jnp
from jax.experimental import pallas as pl
from jax.experimental.pallas import tpu as pltpu


def _round_up(n, m):
    return (n + m - 1) // m * m


def _pad_to(x, shape):
    return jnp.pad(x, [(0, t - s) for s, t in zip(x.shape, shape)])


# ---------------------------------------------------------------------------------
# One-time (per model) weight preprocessing — hoisted out of the per-token path.
# ---------------------------------------------------------------------------------
def prepare_decoder_params(params, *, weight_dtype=jnp.bfloat16):
    f32 = jnp.float32
    H = params["gru_w_hh"].shape[1]
    V = params["out_w"].shape[0]
    Hp = max(128, _round_up(H, 128))   # lane-dense hidden
    Vp = max(128, _round_up(V, 128))   # lane-dense vocab

    w_ih, w_hh = params["gru_w_ih"], params["gru_w_hh"]      # torch layout (3H, H)
    b_ih, b_hh = params["gru_b_ih"], params["gru_b_hh"]      # (3H,)

    def fuse_gates_t(w):   # -> (Hp, 3Hp), gate column blocks [r | z | n], pre-transposed
        return jnp.concatenate(
            [_pad_to(w[g * H:(g + 1) * H].T, (Hp, Hp)) for g in range(3)], axis=1)

    def fuse_bias(b):      # -> (3Hp,)
        return jnp.concatenate([_pad_to(b[g * H:(g + 1) * H], (Hp,)) for g in range(3)])

    wc = params["concat_w"]                                   # (H, 2H)
    prep = {
        "H": H, "V": V, "Hp": Hp, "Vp": Vp, "wdtype": weight_dtype,
        # embedding pre-padded to Hp so per-step glue is a plain gather
        "emb":   _pad_to(params["emb"].astype(f32), (params["emb"].shape[0], Hp)),
        "wih_t": fuse_gates_t(w_ih).astype(weight_dtype),                       # (Hp, 3Hp)
        "whh_t": fuse_gates_t(w_hh).astype(weight_dtype),                       # (Hp, 3Hp)
        "b_gru": jnp.stack([fuse_bias(b_ih), fuse_bias(b_hh)]).astype(f32),     # (2, 3Hp)
        # concat Linear: rows [0:Hp] act on rnn_output, rows [Hp:2Hp] on context
        "wc_t":  jnp.concatenate([_pad_to(wc[:, :H].T, (Hp, Hp)),
                                  _pad_to(wc[:, H:].T, (Hp, Hp))], 0).astype(weight_dtype),
        "bc":    _pad_to(params["concat_b"].astype(f32), (Hp,))[None],          # (1, Hp)
        # out Linear: padded vocab lanes get -1e30 bias -> exactly 0 softmax mass
        "wo_t":  _pad_to(params["out_w"].T, (Hp, Vp)).astype(weight_dtype),     # (Hp, Vp)
        "bo":    jnp.full((Vp,), -1e30, f32).at[:V].set(params["out_b"].astype(f32))[None],
    }
    return prep


# ---------------------------------------------------------------------------------
# Kernel: one decoder step per grid point t; hidden state carried in VMEM scratch.
# ---------------------------------------------------------------------------------
def _make_decoder_kernel(L, Hp):
    f32 = jnp.float32

    def kernel(x_ref, h0_ref, enc_ref, wih_ref, whh_ref, bgru_ref,
               wc_ref, bc_ref, wo_ref, bo_ref, out_ref, hid_ref, h_scr):
        t = pl.program_id(0)
        wdt = wih_ref.dtype

        @pl.when(t == 0)
        def _():
            # initial hidden (zero on padded lanes; the GRU recursion keeps them exactly 0)
            h_scr[...] = h0_ref[...]

        x = x_ref[0]                                   # (Bp, Hp) f32, embedded token t
        h = h_scr[...]                                 # (Bp, Hp) f32, carried hidden
        enc = enc_ref[...]                             # (Bp, Lp, Hp) bf16, VMEM-resident
        bg = bgru_ref[...]                             # (2, 3Hp) f32

        # ---- GRU single step: two fused MXU pushes, f32 accumulation & gate math -----
        gi = jnp.dot(x.astype(wdt), wih_ref[...], preferred_element_type=f32) + bg[0:1, :]
        gh = jnp.dot(h.astype(wdt), whh_ref[...], preferred_element_type=f32) + bg[1:2, :]
        r = jax.nn.sigmoid(gi[:, :Hp] + gh[:, :Hp])
        z = jax.nn.sigmoid(gi[:, Hp:2 * Hp] + gh[:, Hp:2 * Hp])
        n = jnp.tanh(gi[:, 2 * Hp:] + r * gh[:, 2 * Hp:])
        h_new = (1.0 - z) * n + z * h                  # (Bp, Hp) == rnn_output.squeeze(0)

        # ---- dot attention on the MXU; lane-dense softmax over padded L ---------------
        hq = h_new[:, None, :].astype(wdt)             # (Bp, 1, Hp)
        s = jnp.einsum('bqh,blh->bql', hq, enc,
                       preferred_element_type=f32)     # (Bp, 1, Lp)
        Lp = s.shape[-1]
        lane = jax.lax.broadcasted_iota(jnp.int32, (1, 1, Lp), 2)
        s = jnp.where(lane < L, s, -1e30)              # mask padded L lanes
        m = jnp.max(s, axis=2, keepdims=True)
        e = jnp.exp(s - m)
        p = e / jnp.sum(e, axis=2, keepdims=True)      # softmax over L (padded lanes -> 0)
        ctx = jnp.einsum('bql,blh->bqh', p.astype(wdt), enc,
                         preferred_element_type=f32)[:, 0, :]   # (Bp, Hp)

        # ---- concat Linear + tanh: single fused (Bp, 2Hp) @ (2Hp, Hp) MXU push --------
        cat = jnp.concatenate([h_new, ctx], axis=1).astype(wdt)
        co = jnp.tanh(jnp.dot(cat, wc_ref[...], preferred_element_type=f32) + bc_ref[...])

        # ---- output Linear + softmax over lane-dense padded vocab ---------------------
        logits = (jnp.dot(co.astype(wdt), wo_ref[...], preferred_element_type=f32)
                  + bo_ref[...])
        lm = jnp.max(logits, axis=1, keepdims=True)
        le = jnp.exp(logits - lm)
        out_ref[0] = le / jnp.sum(le, axis=1, keepdims=True)

        hid_ref[0] = h_new
        h_scr[...] = h_new                             # carry hidden to step t+1

    return kernel


# ---------------------------------------------------------------------------------
# Fused multi-step decode: one pallas_call over T steps, weights DMA'd once.
# ---------------------------------------------------------------------------------
def luong_attn_decoder_decode(input_steps, last_hidden, encoder_outputs, prep):
    """input_steps: (T, B) int32; last_hidden: (1, B, H); encoder_outputs: (L, B, H).
    Returns (outputs (T, B, V) softmax, hiddens (T, B, H))."""
    f32 = jnp.float32
    T, B = input_steps.shape
    L, _, H = encoder_outputs.shape
    Hp, Vp, V = prep["Hp"], prep["Vp"], prep["V"]
    Bp = max(8, _round_up(B, 8))
    Lp = max(128, _round_up(L, 128))
    wdt = prep["wdtype"]

    # Per-call glue: embedding gather (dropout = identity in eval) + activation pads.
    x = _pad_to(prep["emb"][input_steps], (T, Bp, Hp))                 # (T, Bp, Hp) f32
    h0 = _pad_to(last_hidden[0].astype(f32), (Bp, Hp))                 # (Bp, Hp) f32
    # Encoder outputs padded/cast ONCE per decoded sequence, laid out (Bp, Lp, Hp) so the
    # softmax over L is lane-dense; bf16 operands, f32 MXU accumulation in-kernel.
    enc = _pad_to(jnp.transpose(encoder_outputs, (1, 0, 2)).astype(f32),
                  (Bp, Lp, Hp)).astype(wdt)

    step3 = lambda t: (t, 0, 0)
    const2 = lambda t: (0, 0)
    const3 = lambda t: (0, 0, 0)

    def full2(a):   # whole-array block, constant index -> DMA once, VMEM-resident over T
        return pl.BlockSpec(a.shape, const2)

    in_specs = [
        pl.BlockSpec((1, Bp, Hp), step3),                # x: one step per grid point
        full2(h0),                                       # initial hidden (read at t==0)
        pl.BlockSpec((Bp, Lp, Hp), const3),              # encoder outputs (resident)
        full2(prep["wih_t"]), full2(prep["whh_t"]), full2(prep["b_gru"]),
        full2(prep["wc_t"]), full2(prep["bc"]),
        full2(prep["wo_t"]), full2(prep["bo"]),
    ]
    out_specs = (pl.BlockSpec((1, Bp, Vp), step3),
                 pl.BlockSpec((1, Bp, Hp), step3))

    # Advisory cost estimate so XLA schedules the call sensibly inside a decode loop.
    flops = int(2 * T * Bp * (2 * Hp * 3 * Hp + 2 * Lp * Hp + 2 * Hp * Hp + Hp * Vp))
    transcendentals = int(T * Bp * (4 * Hp + Lp + Vp))
    w_bytes = sum(int(prep[k].size) * jnp.dtype(wdt).itemsize
                  for k in ("wih_t", "whh_t", "wc_t", "wo_t"))
    bytes_accessed = int(w_bytes + enc.size * 2 + T * Bp * (2 * Hp + Vp) * 4)

    out_p, hid_p = pl.pallas_call(
        _make_decoder_kernel(L, Hp),
        out_shape=(jax.ShapeDtypeStruct((T, Bp, Vp), f32),
                   jax.ShapeDtypeStruct((T, Bp, Hp), f32)),
        grid_spec=pltpu.PrefetchScalarGridSpec(
            num_scalar_prefetch=0, grid=(T,),
            in_specs=in_specs, out_specs=out_specs,
            scratch_shapes=[pltpu.VMEM((Bp, Hp), f32)]),   # carried hidden state
        compiler_params=pltpu.CompilerParams(
            dimension_semantics=("arbitrary",),            # sequential hidden dependency
            vmem_limit_bytes=48 * 1024 * 1024),
        cost_estimate=pl.CostEstimate(flops=flops, transcendentals=transcendentals,
                                      bytes_accessed=bytes_accessed),
    )(x, h0, enc, prep["wih_t"], prep["whh_t"], prep["b_gru"],
      prep["wc_t"], prep["bc"], prep["wo_t"], prep["bo"])

    return out_p[:, :B, :V], hid_p[:, :B, :H]


def luong_attn_decoder_forward(input_step, last_hidden, encoder_outputs, prep):
    """Single-step, module-equivalent forward: input_step (1, B) -> ((B, V), (1, B, H))."""
    out, hid = luong_attn_decoder_decode(input_step, last_hidden, encoder_outputs, prep)
    return out[0], hid[0][None]


# ---------------------------------------------------------------------------------
# Pure-JAX f32 reference matching the PyTorch module (eval mode).
# ---------------------------------------------------------------------------------
def reference_forward(input_step, last_hidden, encoder_outputs, params):
    H = params["gru_w_hh"].shape[1]
    x = params["emb"][input_step[0]]
    h = last_hidden[0]
    gi = x @ params["gru_w_ih"].T + params["gru_b_ih"]
    gh = h @ params["gru_w_hh"].T + params["gru_b_hh"]
    r = jax.nn.sigmoid(gi[:, :H] + gh[:, :H])
    z = jax.nn.sigmoid(gi[:, H:2 * H] + gh[:, H:2 * H])
    n = jnp.tanh(gi[:, 2 * H:] + r * gh[:, 2 * H:])
    h_new = (1.0 - z) * n + z * h
    scores = jnp.sum(h_new[None] * encoder_outputs, axis=2)          # (L, B)
    attn = jax.nn.softmax(scores.T, axis=1)                          # (B, L)
    context = jnp.einsum('bl,lbh->bh', attn, encoder_outputs)        # (B, H)
    cat = jnp.concatenate([h_new, context], axis=1)
    cat_out = jnp.tanh(cat @ params["concat_w"].T + params["concat_b"])
    logits = cat_out @ params["out_w"].T + params["out_b"]
    return jax.nn.softmax(logits, axis=1), h_new[None]


def init_params(key, vocab_size, hidden_size):
    ks = jax.random.split(key, 8)
    s = 0.1
    return {
        "emb":      s * jax.random.normal(ks[0], (vocab_size, hidden_size), jnp.float32),
        "gru_w_ih": s * jax.random.normal(ks[1], (3 * hidden_size, hidden_size), jnp.float32),
        "gru_w_hh": s * jax.random.normal(ks[2], (3 * hidden_size, hidden_size), jnp.float32),
        "gru_b_ih": s * jax.random.normal(ks[3], (3 * hidden_size,), jnp.float32),
        "gru_b_hh": s * jax.random.normal(ks[4], (3 * hidden_size,), jnp.float32),
        "concat_w": s * jax.random.normal(ks[5], (hidden_size, 2 * hidden_size), jnp.float32),
        "concat_b": jnp.zeros((hidden_size,), jnp.float32),
        "out_w":    s * jax.random.normal(ks[6], (vocab_size, hidden_size), jnp.float32),
        "out_b":    jnp.zeros((vocab_size,), jnp.float32),
    }


if __name__ == "__main__":
    B, H, L, V, T = 2, 32, 8, 48, 4   # batch, hidden, encoder len, vocab, decode steps

    key = jax.random.PRNGKey(0)
    kp, k1, k2, k3 = jax.random.split(key, 4)
    params = init_params(kp, V, H)
    prep = prepare_decoder_params(params)        # one-time weight prep (hoisted per feedback)

    input_steps = jax.random.randint(k1, (T, B), 0, V, jnp.int32)            # (T, B)
    last_hidden = 0.1 * jax.random.normal(k2, (1, B, H), jnp.float32)        # (1, B, H)
    encoder_outputs = 0.1 * jax.random.normal(k3, (L, B, H), jnp.float32)    # (L, B, H)

    # --- single-step call (exact module forward semantics) -------------------------
    output, hidden = luong_attn_decoder_forward(input_steps[:1], last_hidden,
                                                encoder_outputs, prep)
    jax.block_until_ready((output, hidden))
    assert output.shape == (B, V) and hidden.shape == (1, B, H)
    assert bool(jnp.allclose(jnp.sum(output, axis=1), 1.0, atol=1e-5))
    ref_out, ref_hid = reference_forward(input_steps[:1], last_hidden, encoder_outputs, params)
    assert bool(jnp.allclose(output, ref_out, atol=2e-2))
    assert bool(jnp.allclose(hidden, ref_hid, atol=2e-2))

    # --- fused T-step decode (weights / enc stay VMEM-resident across steps) -------
    outs, hids = luong_attn_decoder_decode(input_steps, last_hidden, encoder_outputs, prep)
    jax.block_until_ready((outs, hids))
    assert outs.shape == (T, B, V) and hids.shape == (T, B, H)
    assert bool(jnp.allclose(jnp.sum(outs, axis=2), 1.0, atol=1e-5))

    h_ref = last_hidden
    for t in range(T):
        r_out, h_ref = reference_forward(input_steps[t:t + 1], h_ref, encoder_outputs, params)
        assert bool(jnp.allclose(outs[t], r_out, atol=2e-2))
        assert bool(jnp.allclose(hids[t], h_ref[0], atol=2e-2))

    print("KERNEL_OK")
</pallas_src>

<mosaic_0001>
module attributes {stable_mosaic.version = 11 : i64} {
  func.func @kernel(%arg0: i32, %arg1: memref<1x8x128xf32, #tpu.memory_space<vmem>>, %arg2: memref<8x128xf32, #tpu.memory_space<vmem>>, %arg3: memref<8x128x128xbf16, #tpu.memory_space<vmem>>, %arg4: memref<128x384xbf16, #tpu.memory_space<vmem>>, %arg5: memref<128x384xbf16, #tpu.memory_space<vmem>>, %arg6: memref<2x384xf32, #tpu.memory_space<vmem>>, %arg7: memref<256x128xbf16, #tpu.memory_space<vmem>>, %arg8: memref<1x128xf32, #tpu.memory_space<vmem>>, %arg9: memref<128x128xbf16, #tpu.memory_space<vmem>>, %arg10: memref<1x128xf32, #tpu.memory_space<vmem>>, %arg11: memref<1x8x128xf32, #tpu.memory_space<vmem>>, %arg12: memref<1x8x128xf32, #tpu.memory_space<vmem>>, %arg13: memref<8x128xf32, #tpu.memory_space<vmem>>) attributes {dimension_semantics = [#tpu.dimension_semantics<arbitrary>], iteration_bounds = array<i64: 1>, scalar_prefetch = 0 : i64, scratch_operands = 1 : i64, tpu.core_type = #tpu.core_type<tc>, window_params = [{transform_indices = @transform_0, window_bounds = array<i64: 1, 8, 128>}, {pipeline_mode = #tpu.pipeline_mode<synchronous>, transform_indices = @transform_1, window_bounds = array<i64: 8, 128>}, {pipeline_mode = #tpu.pipeline_mode<synchronous>, transform_indices = @transform_2, window_bounds = array<i64: 8, 128, 128>}, {pipeline_mode = #tpu.pipeline_mode<synchronous>, transform_indices = @transform_3, window_bounds = array<i64: 128, 384>}, {pipeline_mode = #tpu.pipeline_mode<synchronous>, transform_indices = @transform_4, window_bounds = array<i64: 128, 384>}, {pipeline_mode = #tpu.pipeline_mode<synchronous>, transform_indices = @transform_5, window_bounds = array<i64: 2, 384>}, {pipeline_mode = #tpu.pipeline_mode<synchronous>, transform_indices = @transform_6, window_bounds = array<i64: 256, 128>}, {pipeline_mode = #tpu.pipeline_mode<synchronous>, transform_indices = @transform_7, window_bounds = array<i64: 1, 128>}, {pipeline_mode = #tpu.pipeline_mode<synchronous>, transform_indices = @transform_8, window_bounds = array<i64: 128, 128>}, {pipeline_mode = #tpu.pipeline_mode<synchronous>, transform_indices = @transform_9, window_bounds = array<i64: 1, 128>}, {transform_indices = @transform_10, window_bounds = array<i64: 1, 8, 128>}, {transform_indices = @transform_11, window_bounds = array<i64: 1, 8, 128>}]} {
    %c0_i32 = arith.constant 0 : i32
    %0 = arith.cmpi eq, %arg0, %c0_i32 : i32
    %1 = arith.extui %0 : i1 to i32
    %c0_i32_0 = arith.constant 0 : i32
    %2 = arith.cmpi ne, %1, %c0_i32_0 : i32
    scf.if %2 {
      %c0_43 = arith.constant 0 : index
      %c0_44 = arith.constant 0 : index
      %98 = vector.load %arg2[%c0_43, %c0_44] : memref<8x128xf32, #tpu.memory_space<vmem>>, vector<8x128xf32>
      %c0_45 = arith.constant 0 : index
      %c0_46 = arith.constant 0 : index
      %99 = vector.load %arg13[%c0_45, %c0_46] : memref<8x128xf32, #tpu.memory_space<vmem>>, vector<8x128xf32>
      tpu.vector_store %arg13[%c0_45, %c0_46], %98 {strides = array<i32>} : memref<8x128xf32, #tpu.memory_space<vmem>>, vector<8x128xf32>,
    } else {
    }
    %c0 = arith.constant 0 : index
    %c0_1 = arith.constant 0 : index
    %c0_2 = arith.constant 0 : index
    %3 = vector.load %arg1[%c0, %c0_1, %c0_2] : memref<1x8x128xf32, #tpu.memory_space<vmem>>, vector<1x8x128xf32>
    %4 = vector.shape_cast %3 : vector<1x8x128xf32> to vector<8x128xf32>
    %c0_3 = arith.constant 0 : index
    %c0_4 = arith.constant 0 : index
    %5 = vector.load %arg13[%c0_3, %c0_4] : memref<8x128xf32, #tpu.memory_space<vmem>>, vector<8x128xf32>
    %c0_5 = arith.constant 0 : index
    %c0_6 = arith.constant 0 : index
    %c0_7 = arith.constant 0 : index
    %6 = vector.load %arg3[%c0_5, %c0_6, %c0_7] : memref<8x128x128xbf16, #tpu.memory_space<vmem>>, vector<8x128x128xbf16>
    %c0_8 = arith.constant 0 : index
    %c0_9 = arith.constant 0 : index
    %7 = vector.load %arg6[%c0_8, %c0_9] : memref<2x384xf32, #tpu.memory_space<vmem>>, vector<2x384xf32>
    %8 = arith.truncf %4 : vector<8x128xf32> to vector<8x128xbf16>
    %c0_10 = arith.constant 0 : index
    %c0_11 = arith.constant 0 : index
    %9 = vector.load %arg4[%c0_10, %c0_11] : memref<128x384xbf16, #tpu.memory_space<vmem>>, vector<128x384xbf16>
    %cst = arith.constant dense<0.000000e+00> : vector<8x384xf32>
    %10 = tpu.matmul %8, %9, %cst {dimension_numbers = #tpu.dot_dimension_numbers<[1], [0], [0], [1], [0, 0, 1, 1], [], []>} : vector<8x128xbf16>, vector<128x384xbf16>, vector<8x384xf32> -> vector<8x384xf32>
    %11 = vector.extract_strided_slice %7 {offsets = [0, 0], sizes = [1, 384], strides = [1, 1]} : vector<2x384xf32> to vector<1x384xf32>
    %12 = vector.broadcast %11 : vector<1x384xf32> to vector<8x384xf32>
    %13 = arith.addf %10, %12 : vector<8x384xf32>
    %14 = arith.truncf %5 : vector<8x128xf32> to vector<8x128xbf16>
    %c0_12 = arith.constant 0 : index
    %c0_13 = arith.constant 0 : index
    %15 = vector.load %arg5[%c0_12, %c0_13] : memref<128x384xbf16, #tpu.memory_space<vmem>>, vector<128x384xbf16>
    %cst_14 = arith.constant dense<0.000000e+00> : vector<8x384xf32>
    %16 = tpu.matmul %14, %15, %cst_14 {dimension_numbers = #tpu.dot_dimension_numbers<[1], [0], [0], [1], [0, 0, 1, 1], [], []>} : vector<8x128xbf16>, vector<128x384xbf16>, vector<8x384xf32> -> vector<8x384xf32>
    %17 = vector.extract_strided_slice %7 {offsets = [1, 0], sizes = [1, 384], strides = [1, 1]} : vector<2x384xf32> to vector<1x384xf32>
    %18 = vector.broadcast %17 : vector<1x384xf32> to vector<8x384xf32>
    %19 = arith.addf %16, %18 : vector<8x384xf32>
    %20 = vector.extract_strided_slice %13 {offsets = [0, 0], sizes = [8, 128], strides = [1, 1]} : vector<8x384xf32> to vector<8x128xf32>
    %21 = vector.extract_strided_slice %19 {offsets = [0, 0], sizes = [8, 128], strides = [1, 1]} : vector<8x384xf32> to vector<8x128xf32>
    %22 = arith.addf %20, %21 : vector<8x128xf32>
    %23 = arith.negf %22 : vector<8x128xf32>
    %24 = math.exp %23 : vector<8x128xf32>
    %cst_15 = arith.constant 1.000000e+00 : f32
    %25 = vector.broadcast %cst_15 : f32 to vector<8x128xf32>
    %26 = arith.addf %25, %24 : vector<8x128xf32>
    %27 = arith.divf %25, %26 : vector<8x128xf32>
    %28 = vector.extract_strided_slice %13 {offsets = [0, 128], sizes = [8, 128], strides = [1, 1]} : vector<8x384xf32> to vector<8x128xf32>
    %29 = vector.extract_strided_slice %19 {offsets = [0, 128], sizes = [8, 128], strides = [1, 1]} : vector<8x384xf32> to vector<8x128xf32>
    %30 = arith.addf %28, %29 : vector<8x128xf32>
    %31 = arith.negf %30 : vector<8x128xf32>
    %32 = math.exp %31 : vector<8x128xf32>
    %cst_16 = arith.constant 1.000000e+00 : f32
    %33 = vector.broadcast %cst_16 : f32 to vector<8x128xf32>
    %34 = arith.addf %33, %32 : vector<8x128xf32>
    %35 = arith.divf %33, %34 : vector<8x128xf32>
    %36 = vector.extract_strided_slice %13 {offsets = [0, 256], sizes = [8, 128], strides = [1, 1]} : vector<8x384xf32> to vector<8x128xf32>
    %37 = vector.extract_strided_slice %19 {offsets = [0, 256], sizes = [8, 128], strides = [1, 1]} : vector<8x384xf32> to vector<8x128xf32>
    %38 = arith.mulf %27, %37 : vector<8x128xf32>
    %39 = arith.addf %36, %38 : vector<8x128xf32>
    %40 = math.tanh %39 : vector<8x128xf32>
    %cst_17 = arith.constant 1.000000e+00 : f32
    %41 = vector.broadcast %cst_17 : f32 to vector<8x128xf32>
    %42 = arith.subf %41, %35 : vector<8x128xf32>
    %43 = arith.mulf %42, %40 : vector<8x128xf32>
    %44 = arith.mulf %35, %5 : vector<8x128xf32>
    %45 = arith.addf %43, %44 : vector<8x128xf32>
    %46 = vector.shape_cast %45 : vector<8x128xf32> to vector<8x1x128xf32>
    %47 = arith.truncf %46 : vector<8x1x128xf32> to vector<8x1x128xbf16>
    "tpu.trace_start"() <{level = 10 : i32, message = "bqh,blh->bql"}> : () -> ()
    %cst_18 = arith.constant dense<0.000000e+00> : vector<8x1x128xf32>
    %48 = tpu.matmul %47, %6, %cst_18 {dimension_numbers = #tpu.dot_dimension_numbers<[2], [2], [1], [1], [0, 0, 0, 1, 1, 1], [0], [0]>} : vector<8x1x128xbf16>, vector<8x128x128xbf16>, vector<8x1x128xf32> -> vector<8x1x128xf32>
    "tpu.trace_stop"() : () -> ()
    %49 = tpu.iota {dimensions = array<i32: 2>} : vector<1x1x128xi32>
    %c8_i32 = arith.constant 8 : i32
    %50 = vector.broadcast %c8_i32 : i32 to vector<1x1x128xi32>
    %51 = arith.cmpi slt, %49, %50 : vector<1x1x128xi32>
    %cst_19 = arith.constant -1.000000e+30 : f32
    %52 = vector.shape_cast %51 : vector<1x1x128xi1> to vector<1x1x128xi1>
    %53 = vector.broadcast %52 : vector<1x1x128xi1> to vector<8x1x128xi1>
    %54 = vector.broadcast %cst_19 : f32 to vector<8x1x128xf32>
    %55 = arith.select %53, %48, %54 : vector<8x1x128xi1>, vector<8x1x128xf32>
    %cst_20 = arith.constant dense<0xFF800000> : vector<8x1xf32>
    %56 = vector.multi_reduction <maximumf>, %55, %cst_20 [2] : vector<8x1x128xf32> to vector<8x1xf32>
    %57 = vector.shape_cast %56 : vector<8x1xf32> to vector<8x1x1xf32>
    %58 = vector.broadcast %57 : vector<8x1x1xf32> to vector<8x1x128xf32>
    %59 = arith.subf %55, %58 : vector<8x1x128xf32>
    %60 = math.exp %59 : vector<8x1x128xf32>
    %cst_21 = arith.constant dense<0.000000e+00> : vector<8x1xf32>
    %61 = vector.multi_reduction <add>, %60, %cst_21 [2] : vector<8x1x128xf32> to vector<8x1xf32>
    %62 = vector.shape_cast %61 : vector<8x1xf32> to vector<8x1x1xf32>
    %63 = vector.broadcast %62 : vector<8x1x1xf32> to vector<8x1x128xf32>
    %64 = arith.divf %60, %63 : vector<8x1x128xf32>
    %65 = arith.truncf %64 : vector<8x1x128xf32> to vector<8x1x128xbf16>
    "tpu.trace_start"() <{level = 10 : i32, message = "bql,blh->bqh"}> : () -> ()
    %cst_22 = arith.constant dense<0.000000e+00> : vector<8x1x128xf32>
    %66 = tpu.matmul %65, %6, %cst_22 {dimension_numbers = #tpu.dot_dimension_numbers<[2], [1], [1], [2], [0, 0, 0, 1, 1, 2], [0], [0]>} : vector<8x1x128xbf16>, vector<8x128x128xbf16>, vector<8x1x128xf32> -> vector<8x1x128xf32>
    "tpu.trace_stop"() : () -> ()
    %67 = vector.shape_cast %66 : vector<8x1x128xf32> to vector<8x128xf32>
    %68 = tpu.concatenate %45, %67 in 1 : vector<8x128xf32>, vector<8x128xf32> -> vector<8x256xf32>
    %69 = arith.truncf %68 : vector<8x256xf32> to vector<8x256xbf16>
    %c0_23 = arith.constant 0 : index
    %c0_24 = arith.constant 0 : index
    %70 = vector.load %arg7[%c0_23, %c0_24] : memref<256x128xbf16, #tpu.memory_space<vmem>>, vector<256x128xbf16>
    %cst_25 = arith.constant dense<0.000000e+00> : vector<8x128xf32>
    %71 = tpu.matmul %69, %70, %cst_25 {dimension_numbers = #tpu.dot_dimension_numbers<[1], [0], [0], [1], [0, 0, 1, 1], [], []>} : vector<8x256xbf16>, vector<256x128xbf16>, vector<8x128xf32> -> vector<8x128xf32>
    %c0_26 = arith.constant 0 : index
    %c0_27 = arith.constant 0 : index
    %72 = vector.load %arg8[%c0_26, %c0_27] : memref<1x128xf32, #tpu.memory_space<vmem>>, vector<1x128xf32>
    %73 = vector.broadcast %72 : vector<1x128xf32> to vector<8x128xf32>
    %74 = arith.addf %71, %73 : vector<8x128xf32>
    %75 = math.tanh %74 : vector<8x128xf32>
    %76 = arith.truncf %75 : vector<8x128xf32> to vector<8x128xbf16>
    %c0_28 = arith.constant 0 : index
    %c0_29 = arith.constant 0 : index
    %77 = vector.load %arg9[%c0_28, %c0_29] : memref<128x128xbf16, #tpu.memory_space<vmem>>, vector<128x128xbf16>
    %cst_30 = arith.constant dense<0.000000e+00> : vector<8x128xf32>
    %78 = tpu.matmul %76, %77, %cst_30 {dimension_numbers = #tpu.dot_dimension_numbers<[1], [0], [0], [1], [0, 0, 1, 1], [], []>} : vector<8x128xbf16>, vector<128x128xbf16>, vector<8x128xf32> -> vector<8x128xf32>
    %c0_31 = arith.constant 0 : index
    %c0_32 = arith.constant 0 : index
    %79 = vector.load %arg10[%c0_31, %c0_32] : memref<1x128xf32, #tpu.memory_space<vmem>>, vector<1x128xf32>
    %80 = vector.broadcast %79 : vector<1x128xf32> to vector<8x128xf32>
    %81 = arith.addf %78, %80 : vector<8x128xf32>
    %cst_33 = arith.constant dense<0xFF800000> : vector<8xf32>
    %82 = vector.multi_reduction <maximumf>, %81, %cst_33 [1] : vector<8x128xf32> to vector<8xf32>
    %83 = vector.shape_cast %82 : vector<8xf32> to vector<8x1xf32>
    %84 = vector.broadcast %83 : vector<8x1xf32> to vector<8x128xf32>
    %85 = arith.subf %81, %84 : vector<8x128xf32>
    %86 = math.exp %85 : vector<8x128xf32>
    %cst_34 = arith.constant dense<0.000000e+00> : vector<8xf32>
    %87 = vector.multi_reduction <add>, %86, %cst_34 [1] : vector<8x128xf32> to vector<8xf32>
    %88 = vector.shape_cast %87 : vector<8xf32> to vector<8x1xf32>
    %89 = vector.broadcast %88 : vector<8x1xf32> to vector<8x128xf32>
    %90 = arith.divf %86, %89 : vector<8x128xf32>
    %c0_35 = arith.constant 0 : index
    %c0_36 = arith.constant 0 : index
    %c0_37 = arith.constant 0 : index
    %91 = vector.load %arg11[%c0_35, %c0_36, %c0_37] : memref<1x8x128xf32, #tpu.memory_space<vmem>>, vector<1x8x128xf32>
    %92 = vector.shape_cast %91 : vector<1x8x128xf32> to vector<8x128xf32>
    %93 = vector.shape_cast %90 : vector<8x128xf32> to vector<1x8x128xf32>
    tpu.vector_store %arg11[%c0_35, %c0_36, %c0_37], %93 {strides = array<i32>} : memref<1x8x128xf32, #tpu.memory_space<vmem>>, vector<1x8x128xf32>,
    %c0_38 = arith.constant 0 : index
    %c0_39 = arith.constant 0 : index
    %c0_40 = arith.constant 0 : index
    %94 = vector.load %arg12[%c0_38, %c0_39, %c0_40] : memref<1x8x128xf32, #tpu.memory_space<vmem>>, vector<1x8x128xf32>
    %95 = vector.shape_cast %94 : vector<1x8x128xf32> to vector<8x128xf32>
    %96 = vector.shape_cast %45 : vector<8x128xf32> to vector<1x8x128xf32>
    tpu.vector_store %arg12[%c0_38, %c0_39, %c0_40], %96 {strides = array<i32>} : memref<1x8x128xf32, #tpu.memory_space<vmem>>, vector<1x8x128xf32>,
    %c0_41 = arith.constant 0 : index
    %c0_42 = arith.constant 0 : index
    %97 = vector.load %arg13[%c0_41, %c0_42] : memref<8x128xf32, #tpu.memory_space<vmem>>, vector<8x128xf32>
    tpu.vector_store %arg13[%c0_41, %c0_42], %45 {strides = array<i32>} : memref<8x128xf32, #tpu.memory_space<vmem>>, vector<8x128xf32>,
    return
  }
  func.func @transform_0(%arg0: i32) -> (i32, i32, i32) {
    %c0_i32 = arith.constant 0 : i32
    %c0_i32_0 = arith.constant 0 : i32
    %c0_i32_1 = arith.constant 0 : i32
    return %arg0, %c0_i32, %c0_i32_0 : i32, i32, i32
  }
  func.func @transform_1(%arg0: i32) -> (i32, i32) {
    %c0_i32 = arith.constant 0 : i32
    %c0_i32_0 = arith.constant 0 : i32
    %c0_i32_1 = arith.constant 0 : i32
    return %c0_i32, %c0_i32_0 : i32, i32
  }
  func.func @transform_2(%arg0: i32) -> (i32, i32, i32) {
    %c0_i32 = arith.constant 0 : i32
    %c0_i32_0 = arith.constant 0 : i32
    %c0_i32_1 = arith.constant 0 : i32
    %c0_i32_2 = arith.constant 0 : i32
    return %c0_i32, %c0_i32_0, %c0_i32_1 : i32, i32, i32
  }
  func.func @transform_3(%arg0: i32) -> (i32, i32) {
    %c0_i32 = arith.constant 0 : i32
    %c0_i32_0 = arith.constant 0 : i32
    %c0_i32_1 = arith.constant 0 : i32
    return %c0_i32, %c0_i32_0 : i32, i32
  }
  func.func @transform_4(%arg0: i32) -> (i32, i32) {
    %c0_i32 = arith.constant 0 : i32
    %c0_i32_0 = arith.constant 0 : i32
    %c0_i32_1 = arith.constant 0 : i32
    return %c0_i32, %c0_i32_0 : i32, i32
  }
  func.func @transform_5(%arg0: i32) -> (i32, i32) {
    %c0_i32 = arith.constant 0 : i32
    %c0_i32_0 = arith.constant 0 : i32
    %c0_i32_1 = arith.constant 0 : i32
    return %c0_i32, %c0_i32_0 : i32, i32
  }
  func.func @transform_6(%arg0: i32) -> (i32, i32) {
    %c0_i32 = arith.constant 0 : i32
    %c0_i32_0 = arith.constant 0 : i32
    %c0_i32_1 = arith.constant 0 : i32
    return %c0_i32, %c0_i32_0 : i32, i32
  }
  func.func @transform_7(%arg0: i32) -> (i32, i32) {
    %c0_i32 = arith.constant 0 : i32
    %c0_i32_0 = arith.constant 0 : i32
    %c0_i32_1 = arith.constant 0 : i32
    return %c0_i32, %c0_i32_0 : i32, i32
  }
  func.func @transform_8(%arg0: i32) -> (i32, i32) {
    %c0_i32 = arith.constant 0 : i32
    %c0_i32_0 = arith.constant 0 : i32
    %c0_i32_1 = arith.constant 0 : i32
    return %c0_i32, %c0_i32_0 : i32, i32
  }
  func.func @transform_9(%arg0: i32) -> (i32, i32) {
    %c0_i32 = arith.constant 0 : i32
    %c0_i32_0 = arith.constant 0 : i32
    %c0_i32_1 = arith.constant 0 : i32
    return %c0_i32, %c0_i32_0 : i32, i32
  }
  func.func @transform_10(%arg0: i32) -> (i32, i32, i32) {
    %c0_i32 = arith.constant 0 : i32
    %c0_i32_0 = arith.constant 0 : i32
    %c0_i32_1 = arith.constant 0 : i32
    return %arg0, %c0_i32, %c0_i32_0 : i32, i32, i32
  }
  func.func @transform_11(%arg0: i32) -> (i32, i32, i32) {
    %c0_i32 = arith.constant 0 : i32
    %c0_i32_0 = arith.constant 0 : i32
    %c0_i32_1 = arith.constant 0 : i32
    return %arg0, %c0_i32, %c0_i32_0 : i32, i32, i32
  }
}

</mosaic_0001>

<llo_original>
// kernel: tpu_custom_call.1
$region0: #{tpu_custom_call.1}
  #allocation0 [shape = 'u32[]', space=smem, size = 0x4, offset = 0x4, fixed_abs, tag = 'smem constant byte address 0x4 - core index']
  #allocation1 [shape = 'u32[144,128]{1,0:T(1,128)}', space=vmem, size = 0x12000, scoped, tag = 'internal scratch']
  #allocation2 [shape = 'f32[8,128]{1,0:T(8,128)}', space=vmem, size = 0x1000, scoped, tag = 'scratch operand']
  %s0 = inlined_call_operand.hbm [shape: f32[1,8,128], index: 0, kind: input, shape index: {}]
  %s1 = inlined_call_operand.hbm [shape: f32[8,128], index: 1, kind: input, shape index: {}]
  %s2 = inlined_call_operand.hbm [shape: bf16[8,128,128], index: 2, kind: input, shape index: {}]
  %s3 = inlined_call_operand.hbm [shape: bf16[128,384], index: 3, kind: input, shape index: {}]
  %s4 = inlined_call_operand.hbm [shape: bf16[128,384], index: 4, kind: input, shape index: {}]
  %s5 = inlined_call_operand.vmem [shape: f32[2,384], index: 5, kind: input, shape index: {}]
  %s6 = inlined_call_operand.hbm [shape: bf16[256,128], index: 6, kind: input, shape index: {}]
  %s7 = inlined_call_operand.vmem [shape: f32[1,128], index: 7, kind: input, shape index: {}]
  %s8 = inlined_call_operand.hbm [shape: bf16[128,128], index: 8, kind: input, shape index: {}]
  %s9 = inlined_call_operand.vmem [shape: f32[1,128], index: 9, kind: input, shape index: {}]
  %s10 = inlined_call_operand.hbm [shape: f32[1,8,128], index: 10, kind: output, shape index: {0}]
  %s11 = inlined_call_operand.hbm [shape: f32[1,8,128], index: 11, kind: output, shape index: {1}]
  %12 = xla_tuple %s10, %s11
  %s13 = sld [smem:[#allocation0]]
  $region90: #{tpu_custom_call.1} parent=0
    _
  %s15 = ssub.s32 1, %s13
  %s16 = scalar_select 0, %s15, %s13
  $region1: #{tpu_custom_call.1} parent=0
    #allocation3 [shape = 'u8[4096]{0}', space=vmem, size = 0x1000, scoped, tag = 'input window, operand 0, single buffered']
    #allocation4 [shape = 's32[1]{0}', space=sflag, size = 0x4, scoped, tag = 'scoped memory for tpu_custom_call.1']
    #allocation5 [shape = 's32[1]{0}', space=sflag, size = 0x4, scoped, tag = 'scoped memory for tpu_custom_call.1']
    #allocation6 [shape = 'u8[4096]{0}', space=vmem, size = 0x1000, scoped, tag = 'input window, operand 1, single buffered']
    #allocation7 [shape = 's32[1]{0}', space=sflag, size = 0x4, scoped, tag = 'scoped memory for tpu_custom_call.1']
    #allocation8 [shape = 'u8[262144]{0}', space=vmem, size = 0x40000, scoped, tag = 'input window, operand 2, single buffered']
    #allocation9 [shape = 'u8[98304]{0}', space=vmem, size = 0x18000, scoped, tag = 'input window, operand 3, single buffered']
    #allocation10 [shape = 's32[1]{0}', space=sflag, size = 0x4, scoped, tag = 'scoped memory for tpu_custom_call.1']
    #allocation11 [shape = 'u8[98304]{0}', space=vmem, size = 0x18000, scoped, tag = 'input window, operand 4, single buffered']
    #allocation12 [shape = 'u8[65536]{0}', space=vmem, size = 0x10000, scoped, tag = 'input window, operand 6, single buffered']
    #allocation13 [shape = 's32[1]{0}', space=sflag, size = 0x4, scoped, tag = 'scoped memory for tpu_custom_call.1']
    #allocation14 [shape = 'u8[32768]{0}', space=vmem, size = 0x8000, scoped, tag = 'input window, operand 8, single buffered']
    #allocation15 [shape = 'u8[4096]{0}', space=vmem, size = 0x1000, scoped, tag = 'output window, operand 0, single buffered']
    #allocation16 [shape = 'u8[4096]{0}', space=vmem, size = 0x1000, scoped, tag = 'output window, operand 1, single buffered']
    #allocation17 [shape = 's32[1]{0}', space=sflag, size = 0x4, scoped, tag = 'scoped memory for tpu_custom_call.1']
    %17 = vsyncpa [#allocation4], 0
    %18 = vsyncpa [#allocation7], 0
    %19 = vsyncpa [#allocation10], 0
    %20 = vsyncpa [#allocation13], 0
    %21 = vsyncpa [#allocation5], 0
    %22 = vsyncpa [#allocation17], 0
    // Predicated region
    $region2: #{tpu_custom_call.1} parent=1 // pred_check
      _
    $region3: #{tpu_custom_call.1} parent=1 // pred_check_branch
      %24 = sbr.rel (0) target = $region5
    $region4: #{tpu_custom_call.1} parent=1 // pred_region
      %s26 = ssub.s32 128, 128
      %27 = vsyncadd [#allocation4], %s26
      %s29 = sshll.u32 [#allocation3], 4
      %s30 = int_to_ptr.vmem [resolvable:$true] %s29
      %32 = dma.hbm_to_vmem [thread:$0]  %s0, 128, %s30, [#allocation4]
    $region5: #{tpu_custom_call.1} parent=1 // pred_fallthru
      _
    // Predicated region
    $region6: #{tpu_custom_call.1} parent=1 // pred_check
      _
    $region7: #{tpu_custom_call.1} parent=1 // pred_check_branch
      %34 = sbr.rel (0) target = $region9
    $region8: #{tpu_custom_call.1} parent=1 // pred_region
      %s36 = ssub.s32 128, 128
      %37 = vsyncadd [#allocation7], %s36
      %s39 = sshll.u32 [#allocation6], 4
      %s40 = int_to_ptr.vmem [resolvable:$true] %s39
      %42 = dma.hbm_to_vmem [thread:$0]  %s1, 128, %s40, [#allocation7]
    $region9: #{tpu_custom_call.1} parent=1 // pred_fallthru
      _
    // Predicated region
    $region10: #{tpu_custom_call.1} parent=1 // pred_check
      _
    $region11: #{tpu_custom_call.1} parent=1 // pred_check_branch
      %44 = sbr.rel (0) target = $region13
    $region12: #{tpu_custom_call.1} parent=1 // pred_region
      %s46 = ssub.s32 8192, 8192
      %47 = vsyncadd [#allocation7], %s46
      %s48 = sshll.u32 [#allocation8], 4
      %s49 = int_to_ptr.vmem [resolvable:$true] %s48
      %54 = dma.hbm_to_vmem [thread:$0]  %s2, 8192, %s49, [#allocation7], 64, 64, 4
    $region13: #{tpu_custom_call.1} parent=1 // pred_fallthru
      _
    // Predicated region
    $region14: #{tpu_custom_call.1} parent=1 // pred_check
      _
    $region15: #{tpu_custom_call.1} parent=1 // pred_check_branch
      %56 = sbr.rel (0) target = $region17
    $region16: #{tpu_custom_call.1} parent=1 // pred_region
      %s58 = ssub.s32 3072, 3072
      %59 = vsyncadd [#allocation10], %s58
      %s60 = sshll.u32 [#allocation9], 4
      %s61 = int_to_ptr.vmem [resolvable:$true] %s60
      %66 = dma.hbm_to_vmem [thread:$0]  %s3, 3072, %s61, [#allocation10], 192, 192, 12
    $region17: #{tpu_custom_call.1} parent=1 // pred_fallthru
      _
    // Predicated region
    $region18: #{tpu_custom_call.1} parent=1 // pred_check
      _
    $region19: #{tpu_custom_call.1} parent=1 // pred_check_branch
      %68 = sbr.rel (0) target = $region21
    $region20: #{tpu_custom_call.1} parent=1 // pred_region
      %s70 = ssub.s32 3072, 3072
      %71 = vsyncadd [#allocation10], %s70
      %s72 = sshll.u32 [#allocation11], 4
      %s73 = int_to_ptr.vmem [resolvable:$true] %s72
      %78 = dma.hbm_to_vmem [thread:$0]  %s4, 3072, %s73, [#allocation10], 192, 192, 12
    $region21: #{tpu_custom_call.1} parent=1 // pred_fallthru
      _
    // Predicated region
    $region22: #{tpu_custom_call.1} parent=1 // pred_check
      _
    $region23: #{tpu_custom_call.1} parent=1 // pred_check_branch
      %80 = sbr.rel (0) target = $region25
    $region24: #{tpu_custom_call.1} parent=1 // pred_region
      _
    $region25: #{tpu_custom_call.1} parent=1 // pred_fallthru
      _
    // Predicated region
    $region26: #{tpu_custom_call.1} parent=1 // pred_check
      _
    $region27: #{tpu_custom_call.1} parent=1 // pred_check_branch
      %82 = sbr.rel (0) target = $region29
    $region28: #{tpu_custom_call.1} parent=1 // pred_region
      %s84 = ssub.s32 2048, 2048
      %85 = vsyncadd [#allocation13], %s84
      %s86 = sshll.u32 [#allocation12], 4
      %s87 = int_to_ptr.vmem [resolvable:$true] %s86
      %92 = dma.hbm_to_vmem [thread:$0]  %s6, 2048, %s87, [#allocation13], 64, 64, 4
    $region29: #{tpu_custom_call.1} parent=1 // pred_fallthru
      _
    // Predicated region
    $region30: #{tpu_custom_call.1} parent=1 // pred_check
      _
    $region31: #{tpu_custom_call.1} parent=1 // pred_check_branch
      %94 = sbr.rel (0) target = $region33
    $region32: #{tpu_custom_call.1} parent=1 // pred_region
      _
    $region33: #{tpu_custom_call.1} parent=1 // pred_fallthru
      _
    // Predicated region
    $region34: #{tpu_custom_call.1} parent=1 // pred_check
      _
    $region35: #{tpu_custom_call.1} parent=1 // pred_check_branch
      %96 = sbr.rel (0) target = $region37
    $region36: #{tpu_custom_call.1} parent=1 // pred_region
      %s98 = ssub.s32 1024, 1024
      %99 = vsyncadd [#allocation13], %s98
      %s100 = sshll.u32 [#allocation14], 4
      %s101 = int_to_ptr.vmem [resolvable:$true] %s100
      %106 = dma.hbm_to_vmem [thread:$0]  %s8, 1024, %s101, [#allocation13], 64, 64, 4
    $region37: #{tpu_custom_call.1} parent=1 // pred_fallthru
      _
    // Predicated region
    $region38: #{tpu_custom_call.1} parent=1 // pred_check
      _
    $region39: #{tpu_custom_call.1} parent=1 // pred_check_branch
      %108 = sbr.rel (0) target = $region41
    $region40: #{tpu_custom_call.1} parent=1 // pred_region
      _
    $region41: #{tpu_custom_call.1} parent=1 // pred_fallthru
      _
    // Predicated region
    $region42: #{tpu_custom_call.1} parent=1 // pred_check
      _
    $region43: #{tpu_custom_call.1} parent=1 // pred_check_branch
      %110 = sbr.rel (0) target = $region45
    $region44: #{tpu_custom_call.1} parent=1 // pred_region
      %111 = dma.done [#allocation4], 128
    $region45: #{tpu_custom_call.1} parent=1 // pred_fallthru
      _
    // Predicated region
    $region46: #{tpu_custom_call.1} parent=1 // pred_check
      _
    $region47: #{tpu_custom_call.1} parent=1 // pred_check_branch
      %113 = sbr.rel (0) target = $region49
    $region48: #{tpu_custom_call.1} parent=1 // pred_region
      %114 = dma.done [#allocation7], 128
    $region49: #{tpu_custom_call.1} parent=1 // pred_fallthru
      _
    // Predicated region
    $region50: #{tpu_custom_call.1} parent=1 // pred_check
      _
    $region51: #{tpu_custom_call.1} parent=1 // pred_check_branch
      %116 = sbr.rel (0) target = $region53
    $region52: #{tpu_custom_call.1} parent=1 // pred_region
      %117 = dma.done [#allocation7], 8192
    $region53: #{tpu_custom_call.1} parent=1 // pred_fallthru
      _
    // Predicated region
    $region54: #{tpu_custom_call.1} parent=1 // pred_check
      _
    $region55: #{tpu_custom_call.1} parent=1 // pred_check_branch
      %119 = sbr.rel (0) target = $region57
    $region56: #{tpu_custom_call.1} parent=1 // pred_region
      %120 = dma.done [#allocation10], 3072
    $region57: #{tpu_custom_call.1} parent=1 // pred_fallthru
      _
    // Predicated region
    $region58: #{tpu_custom_call.1} parent=1 // pred_check
      _
    $region59: #{tpu_custom_call.1} parent=1 // pred_check_branch
      %122 = sbr.rel (0) target = $region61
    $region60: #{tpu_custom_call.1} parent=1 // pred_region
      %123 = dma.done [#allocation10], 3072
    $region61: #{tpu_custom_call.1} parent=1 // pred_fallthru
      _
    // Predicated region
    $region62: #{tpu_custom_call.1} parent=1 // pred_check
      _
    $region63: #{tpu_custom_call.1} parent=1 // pred_check_branch
      %125 = sbr.rel (0) target = $region65
    $region64: #{tpu_custom_call.1} parent=1 // pred_region
      %126 = dma.done [#allocation13], 2048
    $region65: #{tpu_custom_call.1} parent=1 // pred_fallthru
      _
    // Predicated region
    $region66: #{tpu_custom_call.1} parent=1 // pred_check
      _
    $region67: #{tpu_custom_call.1} parent=1 // pred_check_branch
      %128 = sbr.rel (0) target = $region69
    $region68: #{tpu_custom_call.1} parent=1 // pred_region
      %129 = dma.done [#allocation13], 1024
    $region69: #{tpu_custom_call.1} parent=1 // pred_fallthru
      _
    %p131 = scmp.eq.s32.totalorder 0, 0
    // Predicated region
    $region70: #{tpu_custom_call.1} parent=1 // pred_check
      %p132 = pneg %p131
    $region71: #{tpu_custom_call.1} parent=1 // pred_check_branch
      %134 = sbr.rel (%p132) target = $region73
    $region72: #{tpu_custom_call.1} parent=1 // pred_region
      %v135 = vld [vmem:[#allocation6] sm:$0xff]
      %136 = vst [vmem:[#allocation2] sm:$0xff] %v135
    $region73: #{tpu_custom_call.1} parent=1 // pred_fallthru
      _
    %v137 = vld [vmem:[#allocation3] sm:$0xff]
    %v138 = vld [vmem:[#allocation2] sm:$0xff]
    %v139 = vld [vmem:[#allocation8] sm:$0xf]
    %v140 = vld [vmem:[#allocation8 + $0x4] sm:$0xf]
    %v141 = vld [vmem:[#allocation8 + $0x8] sm:$0xf]
    %v142 = vld [vmem:[#allocation8 + $0xc] sm:$0xf]
    %v143 = vld [vmem:[#allocation8 + $0x10] sm:$0xf]
    %v144 = vld [vmem:[#allocation8 + $0x14] sm:$0xf]
    %v145 = vld [vmem:[#allocation8 + $0x18] sm:$0xf]
    %v146 = vld [vmem:[#allocation8 + $0x1c] sm:$0xf]
    %v147 = vld [vmem:[#allocation8 + $0x20] sm:$0xf]
    %v148 = vld [vmem:[#allocation8 + $0x24] sm:$0xf]
    %v149 = vld [vmem:[#allocation8 + $0x28] sm:$0xf]
    %v150 = vld [vmem:[#allocation8 + $0x2c] sm:$0xf]
    %v151 = vld [vmem:[#allocation8 + $0x30] sm:$0xf]
    %v152 = vld [vmem:[#allocation8 + $0x34] sm:$0xf]
    %v153 = vld [vmem:[#allocation8 + $0x38] sm:$0xf]
    %v154 = vld [vmem:[#allocation8 + $0x3c] sm:$0xf]
    %v155 = vld [vmem:[#allocation8 + $0x40] sm:$0xf]
    %v156 = vld [vmem:[#allocation8 + $0x44] sm:$0xf]
    %v157 = vld [vmem:[#allocation8 + $0x48] sm:$0xf]
    %v158 = vld [vmem:[#allocation8 + $0x4c] sm:$0xf]
    %v159 = vld [vmem:[#allocation8 + $0x50] sm:$0xf]
    %v160 = vld [vmem:[#allocation8 + $0x54] sm:$0xf]
    %v161 = vld [vmem:[#allocation8 + $0x58] sm:$0xf]
    %v162 = vld [vmem:[#allocation8 + $0x5c] sm:$0xf]
    %v163 = vld [vmem:[#allocation8 + $0x60] sm:$0xf]
    %v164 = vld [vmem:[#allocation8 + $0x64] sm:$0xf]
    %v165 = vld [vmem:[#allocation8 + $0x68] sm:$0xf]
    %v166 = vld [vmem:[#allocation8 + $0x6c] sm:$0xf]
    %v167 = vld [vmem:[#allocation8 + $0x70] sm:$0xf]
    %v168 = vld [vmem:[#allocation8 + $0x74] sm:$0xf]
    %v169 = vld [vmem:[#allocation8 + $0x78] sm:$0xf]
    %v170 = vld [vmem:[#allocation8 + $0x7c] sm:$0xf]
    %v171 = vld [vmem:[#allocation8 + $0x80] sm:$0xf]
    %v172 = vld [vmem:[#allocation8 + $0x84] sm:$0xf]
    %v173 = vld [vmem:[#allocation8 + $0x88] sm:$0xf]
    %v174 = vld [vmem:[#allocation8 + $0x8c] sm:$0xf]
    %v175 = vld [vmem:[#allocation8 + $0x90] sm:$0xf]
    %v176 = vld [vmem:[#allocation8 + $0x94] sm:$0xf]
    %v177 = vld [vmem:[#allocation8 + $0x98] sm:$0xf]
    %v178 = vld [vmem:[#allocation8 + $0x9c] sm:$0xf]
    %v179 = vld [vmem:[#allocation8 + $0xa0] sm:$0xf]
    %v180 = vld [vmem:[#allocation8 + $0xa4] sm:$0xf]
    %v181 = vld [vmem:[#allocation8 + $0xa8] sm:$0xf]
    %v182 = vld [vmem:[#allocation8 + $0xac] sm:$0xf]
    %v183 = vld [vmem:[#allocation8 + $0xb0] sm:$0xf]
    %v184 = vld [vmem:[#allocation8 + $0xb4] sm:$0xf]
    %v185 = vld [vmem:[#allocation8 + $0xb8] sm:$0xf]
    %v186 = vld [vmem:[#allocation8 + $0xbc] sm:$0xf]
    %v187 = vld [vmem:[#allocation8 + $0xc0] sm:$0xf]
    %v188 = vld [vmem:[#allocation8 + $0xc4] sm:$0xf]
    %v189 = vld [vmem:[#allocation8 + $0xc8] sm:$0xf]
    %v190 = vld [vmem:[#allocation8 + $0xcc] sm:$0xf]
    %v191 = vld [vmem:[#allocation8 + $0xd0] sm:$0xf]
    %v192 = vld [vmem:[#allocation8 + $0xd4] sm:$0xf]
    %v193 = vld [vmem:[#allocation8 + $0xd8] sm:$0xf]
    %v194 = vld [vmem:[#allocation8 + $0xdc] sm:$0xf]
    %v195 = vld [vmem:[#allocation8 + $0xe0] sm:$0xf]
    %v196 = vld [vmem:[#allocation8 + $0xe4] sm:$0xf]
    %v197 = vld [vmem:[#allocation8 + $0xe8] sm:$0xf]
    %v198 = vld [vmem:[#allocation8 + $0xec] sm:$0xf]
    %v199 = vld [vmem:[#allocation8 + $0xf0] sm:$0xf]
    %v200 = vld [vmem:[#allocation8 + $0xf4] sm:$0xf]
    %v201 = vld [vmem:[#allocation8 + $0xf8] sm:$0xf]
    %v202 = vld [vmem:[#allocation8 + $0xfc] sm:$0xf]
    %v203 = vld [vmem:[#allocation8 + $0x100] sm:$0xf]
    %v204 = vld [vmem:[#allocation8 + $0x104] sm:$0xf]
    %v205 = vld [vmem:[#allocation8 + $0x108] sm:$0xf]
    %v206 = vld [vmem:[#allocation8 + $0x10c] sm:$0xf]
    %v207 = vld [vmem:[#allocation8 + $0x110] sm:$0xf]
    %v208 = vld [vmem:[#allocation8 + $0x114] sm:$0xf]
    %v209 = vld [vmem:[#allocation8 + $0x118] sm:$0xf]
    %v210 = vld [vmem:[#allocation8 + $0x11c] sm:$0xf]
    %v211 = vld [vmem:[#allocation8 + $0x120] sm:$0xf]
    %v212 = vld [vmem:[#allocation8 + $0x124] sm:$0xf]
    %v213 = vld [vmem:[#allocation8 + $0x128] sm:$0xf]
    %v214 = vld [vmem:[#allocation8 + $0x12c] sm:$0xf]
    %v215 = vld [vmem:[#allocation8 + $0x130] sm:$0xf]
    %v216 = vld [vmem:[#allocation8 + $0x134] sm:$0xf]
    %v217 = vld [vmem:[#allocation8 + $0x138] sm:$0xf]
    %v218 = vld [vmem:[#allocation8 + $0x13c] sm:$0xf]
    %v219 = vld [vmem:[#allocation8 + $0x140] sm:$0xf]
    %v220 = vld [vmem:[#allocation8 + $0x144] sm:$0xf]
    %v221 = vld [vmem:[#allocation8 + $0x148] sm:$0xf]
    %v222 = vld [vmem:[#allocation8 + $0x14c] sm:$0xf]
    %v223 = vld [vmem:[#allocation8 + $0x150] sm:$0xf]
    %v224 = vld [vmem:[#allocation8 + $0x154] sm:$0xf]
    %v225 = vld [vmem:[#allocation8 + $0x158] sm:$0xf]
    %v226 = vld [vmem:[#allocation8 + $0x15c] sm:$0xf]
    %v227 = vld [vmem:[#allocation8 + $0x160] sm:$0xf]
    %v228 = vld [vmem:[#allocation8 + $0x164] sm:$0xf]
    %v229 = vld [vmem:[#allocation8 + $0x168] sm:$0xf]
    %v230 = vld [vmem:[#allocation8 + $0x16c] sm:$0xf]
    %v231 = vld [vmem:[#allocation8 + $0x170] sm:$0xf]
    %v232 = vld [vmem:[#allocation8 + $0x174] sm:$0xf]
    %v233 = vld [vmem:[#allocation8 + $0x178] sm:$0xf]
    %v234 = vld [vmem:[#allocation8 + $0x17c] sm:$0xf]
    %v235 = vld [vmem:[#allocation8 + $0x180] sm:$0xf]
    %v236 = vld [vmem:[#allocation8 + $0x184] sm:$0xf]
    %v237 = vld [vmem:[#allocation8 + $0x188] sm:$0xf]
    %v238 = vld [vmem:[#allocation8 + $0x18c] sm:$0xf]
    %v239 = vld [vmem:[#allocation8 + $0x190] sm:$0xf]
    %v240 = vld [vmem:[#allocation8 + $0x194] sm:$0xf]
    %v241 = vld [vmem:[#allocation8 + $0x198] sm:$0xf]
    %v242 = vld [vmem:[#allocation8 + $0x19c] sm:$0xf]
    %v243 = vld [vmem:[#allocation8 + $0x1a0] sm:$0xf]
    %v244 = vld [vmem:[#allocation8 + $0x1a4] sm:$0xf]
    %v245 = vld [vmem:[#allocation8 + $0x1a8] sm:$0xf]
    %v246 = vld [vmem:[#allocation8 + $0x1ac] sm:$0xf]
    %v247 = vld [vmem:[#allocation8 + $0x1b0] sm:$0xf]
    %v248 = vld [vmem:[#allocation8 + $0x1b4] sm:$0xf]
    %v249 = vld [vmem:[#allocation8 + $0x1b8] sm:$0xf]
    %v250 = vld [vmem:[#allocation8 + $0x1bc] sm:$0xf]
    %v251 = vld [vmem:[#allocation8 + $0x1c0] sm:$0xf]
    %v252 = vld [vmem:[#allocation8 + $0x1c4] sm:$0xf]
    %v253 = vld [vmem:[#allocation8 + $0x1c8] sm:$0xf]
    %v254 = vld [vmem:[#allocation8 + $0x1cc] sm:$0xf]
    %v255 = vld [vmem:[#allocation8 + $0x1d0] sm:$0xf]
    %v256 = vld [vmem:[#allocation8 + $0x1d4] sm:$0xf]
    %v257 = vld [vmem:[#allocation8 + $0x1d8] sm:$0xf]
    %v258 = vld [vmem:[#allocation8 + $0x1dc] sm:$0xf]
    %v259 = vld [vmem:[#allocation8 + $0x1e0] sm:$0xf]
    %v260 = vld [vmem:[#allocation8 + $0x1e4] sm:$0xf]
    %v261 = vld [vmem:[#allocation8 + $0x1e8] sm:$0xf]
    %v262 = vld [vmem:[#allocation8 + $0x1ec] sm:$0xf]
    %v263 = vld [vmem:[#allocation8 + $0x1f0] sm:$0xf]
    %v264 = vld [vmem:[#allocation8 + $0x1f4] sm:$0xf]
    %v265 = vld [vmem:[#allocation8 + $0x1f8] sm:$0xf]
    %v266 = vld [vmem:[#allocation8 + $0x1fc] sm:$0xf]
    %v267 = vld [vmem:[%s5] sm:$0x3f]
    %v268 = vpack.c.bf16 %v137, %v137
    %v269 = vld [vmem:[#allocation9] sm:$0xff]
    %v270 = vld [vmem:[#allocation9 + $0x8] sm:$0xf]
    %v271 = vld [vmem:[#allocation9 + $0xc] sm:$0xff]
    %v272 = vld [vmem:[#allocation9 + $0x14] sm:$0xf]
    %v273 = vld [vmem:[#allocation9 + $0x18] sm:$0xff]
    %v274 = vld [vmem:[#allocation9 + $0x20] sm:$0xf]
    %v275 = vld [vmem:[#allocation9 + $0x24] sm:$0xff]
    %v276 = vld [vmem:[#allocation9 + $0x2c] sm:$0xf]
    %v277 = vld [vmem:[#allocation9 + $0x30] sm:$0xff]
    %v278 = vld [vmem:[#allocation9 + $0x38] sm:$0xf]
    %v279 = vld [vmem:[#allocation9 + $0x3c] sm:$0xff]
    %v280 = vld [vmem:[#allocation9 + $0x44] sm:$0xf]
    %v281 = vld [vmem:[#allocation9 + $0x48] sm:$0xff]
    %v282 = vld [vmem:[#allocation9 + $0x50] sm:$0xf]
    %v283 = vld [vmem:[#allocation9 + $0x54] sm:$0xff]
    %v284 = vld [vmem:[#allocation9 + $0x5c] sm:$0xf]
    %v285 = vld [vmem:[#allocation9 + $0x60] sm:$0xff]
    %v286 = vld [vmem:[#allocation9 + $0x68] sm:$0xf]
    %v287 = vld [vmem:[#allocation9 + $0x6c] sm:$0xff]
    %v288 = vld [vmem:[#allocation9 + $0x74] sm:$0xf]
    %v289 = vld [vmem:[#allocation9 + $0x78] sm:$0xff]
    %v290 = vld [vmem:[#allocation9 + $0x80] sm:$0xf]
    %v291 = vld [vmem:[#allocation9 + $0x84] sm:$0xff]
    %v292 = vld [vmem:[#allocation9 + $0x8c] sm:$0xf]
    %v293 = vld [vmem:[#allocation9 + $0x90] sm:$0xff]
    %v294 = vld [vmem:[#allocation9 + $0x98] sm:$0xf]
    %v295 = vld [vmem:[#allocation9 + $0x9c] sm:$0xff]
    %v296 = vld [vmem:[#allocation9 + $0xa4] sm:$0xf]
    %v297 = vld [vmem:[#allocation9 + $0xa8] sm:$0xff]
    %v298 = vld [vmem:[#allocation9 + $0xb0] sm:$0xf]
    %v299 = vld [vmem:[#allocation9 + $0xb4] sm:$0xff]
    %v300 = vld [vmem:[#allocation9 + $0xbc] sm:$0xf]
    %v302 = vlaneseq
    %v303 = vshrl.u32 %v302, 7
    %v304 = vsub.s32 0, %v303
    %v305 = vrot.slane %v267, %v304
    %v306 = vlaneseq
    %v307 = vshrl.u32 %v306, 7
    %v308 = vsub.s32 2, %v307
    %v309 = vrot.slane %v267, %v308
    %v310 = vlaneseq
    %v311 = vshrl.u32 %v310, 7
    %v312 = vsub.s32 4, %v311
    %v313 = vrot.slane %v267, %v312
    %v317 = vlaneseq
    %v318 = vshrl.u32 %v317, 7
    %v319 = vsub.s32 0, %v318
    %v320 = vrot.slane %v305, %v319
    %v321 = vlaneseq
    %v322 = vshrl.u32 %v321, 7
    %v323 = vsub.s32 0, %v322
    %v324 = vrot.slane %v309, %v323
    %v325 = vlaneseq
    %v326 = vshrl.u32 %v325, 7
    %v327 = vsub.s32 0, %v326
    %v328 = vrot.slane %v313, %v327
    %v361 = vunpack.c.l.b16 %v269
    %v362 = vunpack.c.h.b16 %v269
    %v363 = vunpack.c.l.b16 %v270
    %v364 = vunpack.c.l.b16 %v271
    %v365 = vunpack.c.h.b16 %v271
    %v366 = vunpack.c.l.b16 %v272
    %v367 = vunpack.c.l.b16 %v273
    %v368 = vunpack.c.h.b16 %v273
    %v369 = vunpack.c.l.b16 %v274
    %v370 = vunpack.c.l.b16 %v275
    %v371 = vunpack.c.h.b16 %v275
    %v372 = vunpack.c.l.b16 %v276
    %v373 = vunpack.c.l.b16 %v277
    %v374 = vunpack.c.h.b16 %v277
    %v375 = vunpack.c.l.b16 %v278
    %v376 = vunpack.c.l.b16 %v279
    %v377 = vunpack.c.h.b16 %v279
    %v378 = vunpack.c.l.b16 %v280
    %v379 = vunpack.c.l.b16 %v281
    %v380 = vunpack.c.h.b16 %v281
    %v381 = vunpack.c.l.b16 %v282
    %v382 = vunpack.c.l.b16 %v283
    %v383 = vunpack.c.h.b16 %v283
    %v384 = vunpack.c.l.b16 %v284
    %v385 = vunpack.c.l.b16 %v285
    %v386 = vunpack.c.h.b16 %v285
    %v387 = vunpack.c.l.b16 %v286
    %v388 = vunpack.c.l.b16 %v287
    %v389 = vunpack.c.h.b16 %v287
    %v390 = vunpack.c.l.b16 %v288
    %v391 = vunpack.c.l.b16 %v289
    %v392 = vunpack.c.h.b16 %v289
    %v393 = vunpack.c.l.b16 %v290
    %v394 = vunpack.c.l.b16 %v291
    %v395 = vunpack.c.h.b16 %v291
    %v396 = vunpack.c.l.b16 %v292
    %v397 = vunpack.c.l.b16 %v293
    %v398 = vunpack.c.h.b16 %v293
    %v399 = vunpack.c.l.b16 %v294
    %v400 = vunpack.c.l.b16 %v295
    %v401 = vunpack.c.h.b16 %v295
    %v402 = vunpack.c.l.b16 %v296
    %v403 = vunpack.c.l.b16 %v297
    %v404 = vunpack.c.h.b16 %v297
    %v405 = vunpack.c.l.b16 %v298
    %v406 = vunpack.c.l.b16 %v299
    %v407 = vunpack.c.h.b16 %v299
    %v408 = vunpack.c.l.b16 %v300
    %v409 = vpack.c.b16 %v364, %v361
    %v410 = vpack.c.b16 %v365, %v362
    %v411 = vpack.c.b16 %v366, %v363
    %v412 = vpack.c.b16 %v370, %v367
    %v413 = vpack.c.b16 %v371, %v368
    %v414 = vpack.c.b16 %v372, %v369
    %v415 = vpack.c.b16 %v376, %v373
    %v416 = vpack.c.b16 %v377, %v374
    %v417 = vpack.c.b16 %v378, %v375
    %v418 = vpack.c.b16 %v382, %v379
    %v419 = vpack.c.b16 %v383, %v380
    %v420 = vpack.c.b16 %v384, %v381
    %v421 = vpack.c.b16 %v388, %v385
    %v422 = vpack.c.b16 %v389, %v386
    %v423 = vpack.c.b16 %v390, %v387
    %v424 = vpack.c.b16 %v394, %v391
    %v425 = vpack.c.b16 %v395, %v392
    %v426 = vpack.c.b16 %v396, %v393
    %v427 = vpack.c.b16 %v400, %v397
    %v428 = vpack.c.b16 %v401, %v398
    %v429 = vpack.c.b16 %v402, %v399
    %v430 = vpack.c.b16 %v406, %v403
    %v431 = vpack.c.b16 %v407, %v404
    %v432 = vpack.c.b16 %v408, %v405
    %457 = vmatprep.subr.bf16.mxu0 %v431
    %458 = vmatpush1.bf16.msra.mxu0 %v430
    %459 = vmatprep.subr.bf16.mxu0 %v428
    %460 = vmatpush1.bf16.msra.mxu0 %v427
    %461 = vmatprep.subr.bf16.mxu0 %v425
    %462 = vmatpush1.bf16.msra.mxu0 %v424
    %463 = vmatprep.subr.bf16.mxu0 %v422
    %464 = vmatpush1.bf16.msra.mxu0 %v421
    %465 = vmatprep.subr.bf16.mxu0 %v419
    %466 = vmatpush1.bf16.msra.mxu0 %v418
    %467 = vmatprep.subr.bf16.mxu0 %v416
    %468 = vmatpush1.bf16.msra.mxu0 %v415
    %469 = vmatprep.subr.bf16.mxu0 %v413
    %470 = vmatpush1.bf16.msra.mxu0 %v412
    %471 = vmatprep.subr.bf16.mxu0 %v410
    %472 = vmatpush1.bf16.msra.mxu0 %v409
    %473 = vmatprep.subr.bf16.mxu0 0
    %474 = vmatpush2.bf16.msra.mxu0 0
    %475 = vmatprep.subr.bf16.mxu0 0
    %476 = vmatpush2.bf16.msra.mxu0 0
    %477 = vmatprep.subr.bf16.mxu0 0
    %478 = vmatpush2.bf16.msra.mxu0 0
    %479 = vmatprep.subr.bf16.mxu0 0
    %480 = vmatpush2.bf16.msra.mxu0 0
    %481 = vmatprep.subr.bf16.mxu0 0
    %482 = vmatpush2.bf16.msra.mxu0 0
    %483 = vmatprep.subr.bf16.mxu0 0
    %484 = vmatpush2.bf16.msra.mxu0 0
    %485 = vmatprep.subr.bf16.mxu0 0
    %486 = vmatpush2.bf16.msra.mxu0 0
    %487 = vmatprep.subr.bf16.mxu0 0
    %488 = vmatpush2.bf16.msra.mxu0 0
    %489 = vmatprep.mubr.bf16.mxu0 0
    %490 = vmatmul.mubr.bf16.gmra.mxu0 %v268
    %v491 = vpop.f32.mrf.mxu0
    %v492 = vadd.f32 %v320, %v491
    %v493 = vpop.f32.mrf.mxu0
    %v494 = vadd.f32 %v324, %v493
    %v495 = vpop.f32.mrf.mxu0
    %v496 = vpop.f32.mrf.mxu0
    %497 = vdwg.mxu0
    %498 = vmatprep.subr.bf16.mxu0 0
    %499 = vmatpush1.bf16.msra.mxu0 %v432
    %500 = vmatprep.subr.bf16.mxu0 0
    %501 = vmatpush1.bf16.msra.mxu0 %v429
    %502 = vmatprep.subr.bf16.mxu0 0
    %503 = vmatpush1.bf16.msra.mxu0 %v426
    %504 = vmatprep.subr.bf16.mxu0 0
    %505 = vmatpush1.bf16.msra.mxu0 %v423
    %506 = vmatprep.subr.bf16.mxu0 0
    %507 = vmatpush1.bf16.msra.mxu0 %v420
    %508 = vmatprep.subr.bf16.mxu0 0
    %509 = vmatpush1.bf16.msra.mxu0 %v417
    %510 = vmatprep.subr.bf16.mxu0 0
    %511 = vmatpush1.bf16.msra.mxu0 %v414
    %512 = vmatprep.subr.bf16.mxu0 0
    %513 = vmatpush1.bf16.msra.mxu0 %v411
    %514 = vmatprep.subr.bf16.mxu0 0
    %515 = vmatpush2.bf16.msra.mxu0 0
    %516 = vmatprep.subr.bf16.mxu0 0
    %517 = vmatpush2.bf16.msra.mxu0 0
    %518 = vmatprep.subr.bf16.mxu0 0
    %519 = vmatpush2.bf16.msra.mxu0 0
    %520 = vmatprep.subr.bf16.mxu0 0
    %521 = vmatpush2.bf16.msra.mxu0 0
    %522 = vmatprep.subr.bf16.mxu0 0
    %523 = vmatpush2.bf16.msra.mxu0 0
    %524 = vmatprep.subr.bf16.mxu0 0
    %525 = vmatpush2.bf16.msra.mxu0 0
    %526 = vmatprep.subr.bf16.mxu0 0
    %527 = vmatpush2.bf16.msra.mxu0 0
    %528 = vmatprep.subr.bf16.mxu0 0
    %529 = vmatpush2.bf16.msra.mxu0 0
    %530 = vmatprep.mubr.bf16.mxu0 0
    %531 = vmatmul.mubr.bf16.gmra.mxu0 %v268
    %v532 = vpop.f32.mrf.mxu0
    %v533 = vadd.f32 %v328, %v532
    %v534 = vpop.f32.mrf.mxu0
    %v535 = vpop.f32.mrf.mxu0
    %v536 = vpop.f32.mrf.mxu0
    %537 = vdwg.mxu0
    %v538 = vpack.c.bf16 %v138, %v138
    %v539 = vld [vmem:[#allocation11] sm:$0xff]
    %v540 = vld [vmem:[#allocation11 + $0x8] sm:$0xf]
    %v541 = vld [vmem:[#allocation11 + $0xc] sm:$0xff]
    %v542 = vld [vmem:[#allocation11 + $0x14] sm:$0xf]
    %v543 = vld [vmem:[#allocation11 + $0x18] sm:$0xff]
    %v544 = vld [vmem:[#allocation11 + $0x20] sm:$0xf]
    %v545 = vld [vmem:[#allocation11 + $0x24] sm:$0xff]
    %v546 = vld [vmem:[#allocation11 + $0x2c] sm:$0xf]
    %v547 = vld [vmem:[#allocation11 + $0x30] sm:$0xff]
    %v548 = vld [vmem:[#allocation11 + $0x38] sm:$0xf]
    %v549 = vld [vmem:[#allocation11 + $0x3c] sm:$0xff]
    %v550 = vld [vmem:[#allocation11 + $0x44] sm:$0xf]
    %v551 = vld [vmem:[#allocation11 + $0x48] sm:$0xff]
    %v552 = vld [vmem:[#allocation11 + $0x50] sm:$0xf]
    %v553 = vld [vmem:[#allocation11 + $0x54] sm:$0xff]
    %v554 = vld [vmem:[#allocation11 + $0x5c] sm:$0xf]
    %v555 = vld [vmem:[#allocation11 + $0x60] sm:$0xff]
    %v556 = vld [vmem:[#allocation11 + $0x68] sm:$0xf]
    %v557 = vld [vmem:[#allocation11 + $0x6c] sm:$0xff]
    %v558 = vld [vmem:[#allocation11 + $0x74] sm:$0xf]
    %v559 = vld [vmem:[#allocation11 + $0x78] sm:$0xff]
    %v560 = vld [vmem:[#allocation11 + $0x80] sm:$0xf]
    %v561 = vld [vmem:[#allocation11 + $0x84] sm:$0xff]
    %v562 = vld [vmem:[#allocation11 + $0x8c] sm:$0xf]
    %v563 = vld [vmem:[#allocation11 + $0x90] sm:$0xff]
    %v564 = vld [vmem:[#allocation11 + $0x98] sm:$0xf]
    %v565 = vld [vmem:[#allocation11 + $0x9c] sm:$0xff]
    %v566 = vld [vmem:[#allocation11 + $0xa4] sm:$0xf]
    %v567 = vld [vmem:[#allocation11 + $0xa8] sm:$0xff]
    %v568 = vld [vmem:[#allocation11 + $0xb0] sm:$0xf]
    %v569 = vld [vmem:[#allocation11 + $0xb4] sm:$0xff]
    %v570 = vld [vmem:[#allocation11 + $0xbc] sm:$0xf]
    %v571 = vlaneseq
    %v572 = vshrl.u32 %v571, 7
    %v573 = vsub.s32 1, %v572
    %v574 = vrot.slane %v267, %v573
    %v575 = vlaneseq
    %v576 = vshrl.u32 %v575, 7
    %v577 = vsub.s32 3, %v576
    %v578 = vrot.slane %v267, %v577
    %v579 = vlaneseq
    %v580 = vshrl.u32 %v579, 7
    %v581 = vsub.s32 5, %v580
    %v582 = vrot.slane %v267, %v581
    %v586 = vlaneseq
    %v587 = vshrl.u32 %v586, 7
    %v588 = vsub.s32 1, %v587
    %v589 = vrot.slane %v574, %v588
    %v590 = vlaneseq
    %v591 = vshrl.u32 %v590, 7
    %v592 = vsub.s32 1, %v591
    %v593 = vrot.slane %v578, %v592
    %v594 = vlaneseq
    %v595 = vshrl.u32 %v594, 7
    %v596 = vsub.s32 1, %v595
    %v597 = vrot.slane %v582, %v596
    %v630 = vunpack.c.l.b16 %v539
    %v631 = vunpack.c.h.b16 %v539
    %v632 = vunpack.c.l.b16 %v540
    %v633 = vunpack.c.l.b16 %v541
    %v634 = vunpack.c.h.b16 %v541
    %v635 = vunpack.c.l.b16 %v542
    %v636 = vunpack.c.l.b16 %v543
    %v637 = vunpack.c.h.b16 %v543
    %v638 = vunpack.c.l.b16 %v544
    %v639 = vunpack.c.l.b16 %v545
    %v640 = vunpack.c.h.b16 %v545
    %v641 = vunpack.c.l.b16 %v546
    %v642 = vunpack.c.l.b16 %v547
    %v643 = vunpack.c.h.b16 %v547
    %v644 = vunpack.c.l.b16 %v548
    %v645 = vunpack.c.l.b16 %v549
    %v646 = vunpack.c.h.b16 %v549
    %v647 = vunpack.c.l.b16 %v550
    %v648 = vunpack.c.l.b16 %v551
    %v649 = vunpack.c.h.b16 %v551
    %v650 = vunpack.c.l.b16 %v552
    %v651 = vunpack.c.l.b16 %v553
    %v652 = vunpack.c.h.b16 %v553
    %v653 = vunpack.c.l.b16 %v554
    %v654 = vunpack.c.l.b16 %v555
    %v655 = vunpack.c.h.b16 %v555
    %v656 = vunpack.c.l.b16 %v556
    %v657 = vunpack.c.l.b16 %v557
    %v658 = vunpack.c.h.b16 %v557
    %v659 = vunpack.c.l.b16 %v558
    %v660 = vunpack.c.l.b16 %v559
    %v661 = vunpack.c.h.b16 %v559
    %v662 = vunpack.c.l.b16 %v560
    %v663 = vunpack.c.l.b16 %v561
    %v664 = vunpack.c.h.b16 %v561
    %v665 = vunpack.c.l.b16 %v562
    %v666 = vunpack.c.l.b16 %v563
    %v667 = vunpack.c.h.b16 %v563
    %v668 = vunpack.c.l.b16 %v564
    %v669 = vunpack.c.l.b16 %v565
    %v670 = vunpack.c.h.b16 %v565
    %v671 = vunpack.c.l.b16 %v566
    %v672 = vunpack.c.l.b16 %v567
    %v673 = vunpack.c.h.b16 %v567
    %v674 = vunpack.c.l.b16 %v568
    %v675 = vunpack.c.l.b16 %v569
    %v676 = vunpack.c.h.b16 %v569
    %v677 = vunpack.c.l.b16 %v570
    %v678 = vpack.c.b16 %v633, %v630
    %v679 = vpack.c.b16 %v634, %v631
    %v680 = vpack.c.b16 %v635, %v632
    %v681 = vpack.c.b16 %v639, %v636
    %v682 = vpack.c.b16 %v640, %v637
    %v683 = vpack.c.b16 %v641, %v638
    %v684 = vpack.c.b16 %v645, %v642
    %v685 = vpack.c.b16 %v646, %v643
    %v686 = vpack.c.b16 %v647, %v644
    %v687 = vpack.c.b16 %v651, %v648
    %v688 = vpack.c.b16 %v652, %v649
    %v689 = vpack.c.b16 %v653, %v650
    %v690 = vpack.c.b16 %v657, %v654
    %v691 = vpack.c.b16 %v658, %v655
    %v692 = vpack.c.b16 %v659, %v656
    %v693 = vpack.c.b16 %v663, %v660
    %v694 = vpack.c.b16 %v664, %v661
    %v695 = vpack.c.b16 %v665, %v662
    %v696 = vpack.c.b16 %v669, %v666
    %v697 = vpack.c.b16 %v670, %v667
    %v698 = vpack.c.b16 %v671, %v668
    %v699 = vpack.c.b16 %v675, %v672
    %v700 = vpack.c.b16 %v676, %v673
    %v701 = vpack.c.b16 %v677, %v674
    %726 = vmatprep.subr.bf16.mxu0 %v700
    %727 = vmatpush1.bf16.msra.mxu0 %v699
    %728 = vmatprep.subr.bf16.mxu0 %v697
    %729 = vmatpush1.bf16.msra.mxu0 %v696
    %730 = vmatprep.subr.bf16.mxu0 %v694
    %731 = vmatpush1.bf16.msra.mxu0 %v693
    %732 = vmatprep.subr.bf16.mxu0 %v691
    %733 = vmatpush1.bf16.msra.mxu0 %v690
    %734 = vmatprep.subr.bf16.mxu0 %v688
    %735 = vmatpush1.bf16.msra.mxu0 %v687
    %736 = vmatprep.subr.bf16.mxu0 %v685
    %737 = vmatpush1.bf16.msra.mxu0 %v684
    %738 = vmatprep.subr.bf16.mxu0 %v682
    %739 = vmatpush1.bf16.msra.mxu0 %v681
    %740 = vmatprep.subr.bf16.mxu0 %v679
    %741 = vmatpush1.bf16.msra.mxu0 %v678
    %742 = vmatprep.subr.bf16.mxu0 0
    %743 = vmatpush2.bf16.msra.mxu0 0
    %744 = vmatprep.subr.bf16.mxu0 0
    %745 = vmatpush2.bf16.msra.mxu0 0
    %746 = vmatprep.subr.bf16.mxu0 0
    %747 = vmatpush2.bf16.msra.mxu0 0
    %748 = vmatprep.subr.bf16.mxu0 0
    %749 = vmatpush2.bf16.msra.mxu0 0
    %750 = vmatprep.subr.bf16.mxu0 0
    %751 = vmatpush2.bf16.msra.mxu0 0
    %752 = vmatprep.subr.bf16.mxu0 0
    %753 = vmatpush2.bf16.msra.mxu0 0
    %754 = vmatprep.subr.bf16.mxu0 0
    %755 = vmatpush2.bf16.msra.mxu0 0
    %756 = vmatprep.subr.bf16.mxu0 0
    %757 = vmatpush2.bf16.msra.mxu0 0
    %758 = vmatprep.mubr.bf16.mxu0 0
    %759 = vmatmul.mubr.bf16.gmra.mxu0 %v538
    %v760 = vpop.f32.mrf.mxu0
    %v761 = vadd.f32 %v589, %v760
    %v762 = vpop.f32.mrf.mxu0
    %v763 = vadd.f32 %v593, %v762
    %v764 = vpop.f32.mrf.mxu0
    %v765 = vpop.f32.mrf.mxu0
    %766 = vdwg.mxu0
    %767 = vmatprep.subr.bf16.mxu0 0
    %768 = vmatpush1.bf16.msra.mxu0 %v701
    %769 = vmatprep.subr.bf16.mxu0 0
    %770 = vmatpush1.bf16.msra.mxu0 %v698
    %771 = vmatprep.subr.bf16.mxu0 0
    %772 = vmatpush1.bf16.msra.mxu0 %v695
    %773 = vmatprep.subr.bf16.mxu0 0
    %774 = vmatpush1.bf16.msra.mxu0 %v692
    %775 = vmatprep.subr.bf16.mxu0 0
    %776 = vmatpush1.bf16.msra.mxu0 %v689
    %777 = vmatprep.subr.bf16.mxu0 0
    %778 = vmatpush1.bf16.msra.mxu0 %v686
    %779 = vmatprep.subr.bf16.mxu0 0
    %780 = vmatpush1.bf16.msra.mxu0 %v683
    %781 = vmatprep.subr.bf16.mxu0 0
    %782 = vmatpush1.bf16.msra.mxu0 %v680
    %783 = vmatprep.subr.bf16.mxu0 0
    %784 = vmatpush2.bf16.msra.mxu0 0
    %785 = vmatprep.subr.bf16.mxu0 0
    %786 = vmatpush2.bf16.msra.mxu0 0
    %787 = vmatprep.subr.bf16.mxu0 0
    %788 = vmatpush2.bf16.msra.mxu0 0
    %789 = vmatprep.subr.bf16.mxu0 0
    %790 = vmatpush2.bf16.msra.mxu0 0
    %791 = vmatprep.subr.bf16.mxu0 0
    %792 = vmatpush2.bf16.msra.mxu0 0
    %793 = vmatprep.subr.bf16.mxu0 0
    %794 = vmatpush2.bf16.msra.mxu0 0
    %795 = vmatprep.subr.bf16.mxu0 0
    %796 = vmatpush2.bf16.msra.mxu0 0
    %797 = vmatprep.subr.bf16.mxu0 0
    %798 = vmatpush2.bf16.msra.mxu0 0
    %799 = vmatprep.mubr.bf16.mxu0 0
    %800 = vmatmul.mubr.bf16.gmra.mxu0 %v538
    %v801 = vpop.f32.mrf.mxu0
    %v802 = vadd.f32 %v597, %v801
    %v803 = vpop.f32.mrf.mxu0
    %v804 = vpop.f32.mrf.mxu0
    %v805 = vpop.f32.mrf.mxu0
    %806 = vdwg.mxu0
    %v807 = vadd.f32 %v492, %v761
    %v808 = vxor.u32 %v807, 2147483648
    %v809 = vmul.f32 %v808, 1.442695
    %v810 = vpow.pop %v809
    %v811 = vadd.f32 %v810, 1.0
    %v812 = vrcp.pop %v811
    %v813 = vmul.f32 1.0, %v812
    %v814 = vadd.f32 %v494, %v763
    %v815 = vxor.u32 %v814, 2147483648
    %v816 = vmul.f32 %v815, 1.442695
    %v817 = vpow.pop %v816
    %v818 = vadd.f32 %v817, 1.0
    %v819 = vrcp.pop %v818
    %v820 = vmul.f32 1.0, %v819
    %v821 = vmul.f32 %v813, %v802
    %v822 = vadd.f32 %v533, %v821
    %v823 = vtanh.pop %v822
    %v824 = vsub.f32 1.0, %v820
    %v825 = vmul.f32 %v824, %v823
    %v826 = vmul.f32 %v820, %v138
    %v827 = vadd.f32 %v825, %v826
    %v829 = vcombine.high %v827, %v827
    %v831 = vunpack.c.l.s4 1966171168
    %v832 = vunpack.c.0.s8 %v831
    %v833 = vlaneseq
    %v834 = vshrl.u32 %v833, 7
    %v835 = vsub.s32 %v832, %v834
    %v836 = vrot.slane %v827, %v835
    %v838 = vunpack.c.l.s4 1966171168
    %v839 = vunpack.c.0.s8 %v838
    %v840 = vlaneseq
    %v841 = vshrl.u32 %v840, 7
    %v842 = vsub.s32 %v839, %v841
    %v843 = vrot.slane %v829, %v842
    %v844 = vcombine.high %v836, %v836
    %v845 = vcombine.high %v843, %v843
    %v847 = vunpack.c.l.s4 1966171168
    %v848 = vunpack.c.0.s8 %v847
    %v849 = vlaneseq
    %v850 = vshrl.u32 %v849, 7
    %v851 = vsub.s32 %v848, %v850
    %v852 = vrot.slane %v836, %v851
    %v854 = vunpack.c.l.s4 1966171168
    %v855 = vunpack.c.0.s8 %v854
    %v856 = vlaneseq
    %v857 = vshrl.u32 %v856, 7
    %v858 = vsub.s32 %v855, %v857
    %v859 = vrot.slane %v843, %v858
    %v861 = vunpack.c.l.s4 1966171168
    %v862 = vunpack.c.0.s8 %v861
    %v863 = vlaneseq
    %v864 = vshrl.u32 %v863, 7
    %v865 = vsub.s32 %v862, %v864
    %v866 = vrot.slane %v844, %v865
    %v868 = vunpack.c.l.s4 1966171168
    %v869 = vunpack.c.0.s8 %v868
    %v870 = vlaneseq
    %v871 = vshrl.u32 %v870, 7
    %v872 = vsub.s32 %v869, %v871
    %v873 = vrot.slane %v845, %v872
    %v874 = vcombine.high %v852, %v852
    %v875 = vcombine.high %v859, %v859
    %v876 = vcombine.high %v866, %v866
    %v877 = vcombine.high %v873, %v873
    %v886 = vpack.c.bf16 %v852, %v852
    %v887 = vpack.c.bf16 %v866, %v866
    %v888 = vpack.c.bf16 %v874, %v874
    %v889 = vpack.c.bf16 %v876, %v876
    %v890 = vpack.c.bf16 %v859, %v859
    %v891 = vpack.c.bf16 %v873, %v873
    %v892 = vpack.c.bf16 %v875, %v875
    %v893 = vpack.c.bf16 %v877, %v877
    %v910 = vunpack.c.l.b16 %v139
    %v911 = vunpack.c.l.b16 %v140
    %v912 = vunpack.c.l.b16 %v141
    %v913 = vunpack.c.l.b16 %v142
    %v914 = vunpack.c.l.b16 %v143
    %v915 = vunpack.c.l.b16 %v144
    %v916 = vunpack.c.l.b16 %v145
    %v917 = vunpack.c.l.b16 %v146
    %v918 = vunpack.c.l.b16 %v147
    %v919 = vunpack.c.l.b16 %v148
    %v920 = vunpack.c.l.b16 %v149
    %v921 = vunpack.c.l.b16 %v150
    %v922 = vunpack.c.l.b16 %v151
    %v923 = vunpack.c.l.b16 %v152
    %v924 = vunpack.c.l.b16 %v153
    %v925 = vunpack.c.l.b16 %v154
    %v926 = vpack.c.b16 %v911, %v910
    %v927 = vpack.c.b16 %v913, %v912
    %v928 = vpack.c.b16 %v915, %v914
    %v929 = vpack.c.b16 %v917, %v916
    %v930 = vpack.c.b16 %v919, %v918
    %v931 = vpack.c.b16 %v921, %v920
    %v932 = vpack.c.b16 %v923, %v922
    %v933 = vpack.c.b16 %v925, %v924
    %942 = vmatprep.subr.bf16.mxu0 0
    %943 = vmatpush1.bf16.xpose.msra.mxu0 %v933
    %944 = vmatprep.subr.bf16.mxu0 0
    %945 = vmatpush1.bf16.xpose.msra.mxu0 %v932
    %946 = vmatprep.subr.bf16.mxu0 0
    %947 = vmatpush1.bf16.xpose.msra.mxu0 %v931
    %948 = vmatprep.subr.bf16.mxu0 0
    %949 = vmatpush1.bf16.xpose.msra.mxu0 %v930
    %950 = vmatprep.subr.bf16.mxu0 0
    %951 = vmatpush1.bf16.xpose.msra.mxu0 %v929
    %952 = vmatprep.subr.bf16.mxu0 0
    %953 = vmatpush1.bf16.xpose.msra.mxu0 %v928
    %954 = vmatprep.subr.bf16.mxu0 0
    %955 = vmatpush1.bf16.xpose.msra.mxu0 %v927
    %956 = vmatprep.subr.bf16.mxu0 0
    %957 = vmatpush1.bf16.xpose.msra.mxu0 %v926
    %958 = vmatprep.subr.bf16.mxu0 0
    %959 = vmatpush2.bf16.xpose.msra.mxu0 0
    %960 = vmatprep.subr.bf16.mxu0 0
    %961 = vmatpush2.bf16.xpose.msra.mxu0 0
    %962 = vmatprep.subr.bf16.mxu0 0
    %963 = vmatpush2.bf16.xpose.msra.mxu0 0
    %964 = vmatprep.subr.bf16.mxu0 0
    %965 = vmatpush2.bf16.xpose.msra.mxu0 0
    %966 = vmatprep.subr.bf16.mxu0 0
    %967 = vmatpush2.bf16.xpose.msra.mxu0 0
    %968 = vmatprep.subr.bf16.mxu0 0
    %969 = vmatpush2.bf16.xpose.msra.mxu0 0
    %970 = vmatprep.subr.bf16.mxu0 0
    %971 = vmatpush2.bf16.xpose.msra.mxu0 0
    %972 = vmatprep.subr.bf16.mxu0 0
    %973 = vmatpush2.bf16.xpose.msra.mxu0 0
    %974 = vmatprep.mubr.bf16.mxu0 0
    %975 = vmatmul.mubr.bf16.gmra.mxu0 %v886
    %v976 = vpop.f32.mrf.mxu0
    %v977 = vadd.f32 0.0, %v976
    %v978 = vpop.f32.mrf.mxu0
    %v979 = vpop.f32.mrf.mxu0
    %v980 = vpop.f32.mrf.mxu0
    %981 = vdwg.mxu0
    %v998 = vunpack.c.l.b16 %v155
    %v999 = vunpack.c.l.b16 %v156
    %v1000 = vunpack.c.l.b16 %v157
    %v1001 = vunpack.c.l.b16 %v158
    %v1002 = vunpack.c.l.b16 %v159
    %v1003 = vunpack.c.l.b16 %v160
    %v1004 = vunpack.c.l.b16 %v161
    %v1005 = vunpack.c.l.b16 %v162
    %v1006 = vunpack.c.l.b16 %v163
    %v1007 = vunpack.c.l.b16 %v164
    %v1008 = vunpack.c.l.b16 %v165
    %v1009 = vunpack.c.l.b16 %v166
    %v1010 = vunpack.c.l.b16 %v167
    %v1011 = vunpack.c.l.b16 %v168
    %v1012 = vunpack.c.l.b16 %v169
    %v1013 = vunpack.c.l.b16 %v170
    %v1014 = vpack.c.b16 %v999, %v998
    %v1015 = vpack.c.b16 %v1001, %v1000
    %v1016 = vpack.c.b16 %v1003, %v1002
    %v1017 = vpack.c.b16 %v1005, %v1004
    %v1018 = vpack.c.b16 %v1007, %v1006
    %v1019 = vpack.c.b16 %v1009, %v1008
    %v1020 = vpack.c.b16 %v1011, %v1010
    %v1021 = vpack.c.b16 %v1013, %v1012
    %1030 = vmatprep.subr.bf16.mxu0 0
    %1031 = vmatpush1.bf16.xpose.msra.mxu0 %v1021
    %1032 = vmatprep.subr.bf16.mxu0 0
    %1033 = vmatpush1.bf16.xpose.msra.mxu0 %v1020
    %1034 = vmatprep.subr.bf16.mxu0 0
    %1035 = vmatpush1.bf16.xpose.msra.mxu0 %v1019
    %1036 = vmatprep.subr.bf16.mxu0 0
    %1037 = vmatpush1.bf16.xpose.msra.mxu0 %v1018
    %1038 = vmatprep.subr.bf16.mxu0 0
    %1039 = vmatpush1.bf16.xpose.msra.mxu0 %v1017
    %1040 = vmatprep.subr.bf16.mxu0 0
    %1041 = vmatpush1.bf16.xpose.msra.mxu0 %v1016
    %1042 = vmatprep.subr.bf16.mxu0 0
    %1043 = vmatpush1.bf16.xpose.msra.mxu0 %v1015
    %1044 = vmatprep.subr.bf16.mxu0 0
    %1045 = vmatpush1.bf16.xpose.msra.mxu0 %v1014
    %1046 = vmatprep.subr.bf16.mxu0 0
    %1047 = vmatpush2.bf16.xpose.msra.mxu0 0
    %1048 = vmatprep.subr.bf16.mxu0 0
    %1049 = vmatpush2.bf16.xpose.msra.mxu0 0
    %1050 = vmatprep.subr.bf16.mxu0 0
    %1051 = vmatpush2.bf16.xpose.msra.mxu0 0
    %1052 = vmatprep.subr.bf16.mxu0 0
    %1053 = vmatpush2.bf16.xpose.msra.mxu0 0
    %1054 = vmatprep.subr.bf16.mxu0 0
    %1055 = vmatpush2.bf16.xpose.msra.mxu0 0
    %1056 = vmatprep.subr.bf16.mxu0 0
    %1057 = vmatpush2.bf16.xpose.msra.mxu0 0
    %1058 = vmatprep.subr.bf16.mxu0 0
    %1059 = vmatpush2.bf16.xpose.msra.mxu0 0
    %1060 = vmatprep.subr.bf16.mxu0 0
    %1061 = vmatpush2.bf16.xpose.msra.mxu0 0
    %1062 = vmatprep.mubr.bf16.mxu0 0
    %1063 = vmatmul.mubr.bf16.gmra.mxu0 %v887
    %v1064 = vpop.f32.mrf.mxu0
    %v1065 = vadd.f32 0.0, %v1064
    %v1066 = vpop.f32.mrf.mxu0
    %v1067 = vpop.f32.mrf.mxu0
    %v1068 = vpop.f32.mrf.mxu0
    %1069 = vdwg.mxu0
    %v1086 = vunpack.c.l.b16 %v171
    %v1087 = vunpack.c.l.b16 %v172
    %v1088 = vunpack.c.l.b16 %v173
    %v1089 = vunpack.c.l.b16 %v174
    %v1090 = vunpack.c.l.b16 %v175
    %v1091 = vunpack.c.l.b16 %v176
    %v1092 = vunpack.c.l.b16 %v177
    %v1093 = vunpack.c.l.b16 %v178
    %v1094 = vunpack.c.l.b16 %v179
    %v1095 = vunpack.c.l.b16 %v180
    %v1096 = vunpack.c.l.b16 %v181
    %v1097 = vunpack.c.l.b16 %v182
    %v1098 = vunpack.c.l.b16 %v183
    %v1099 = vunpack.c.l.b16 %v184
    %v1100 = vunpack.c.l.b16 %v185
    %v1101 = vunpack.c.l.b16 %v186
    %v1102 = vpack.c.b16 %v1087, %v1086
    %v1103 = vpack.c.b16 %v1089, %v1088
    %v1104 = vpack.c.b16 %v1091, %v1090
    %v1105 = vpack.c.b16 %v1093, %v1092
    %v1106 = vpack.c.b16 %v1095, %v1094
    %v1107 = vpack.c.b16 %v1097, %v1096
    %v1108 = vpack.c.b16 %v1099, %v1098
    %v1109 = vpack.c.b16 %v1101, %v1100
    %1118 = vmatprep.subr.bf16.mxu0 0
    %1119 = vmatpush1.bf16.xpose.msra.mxu0 %v1109
    %1120 = vmatprep.subr.bf16.mxu0 0
    %1121 = vmatpush1.bf16.xpose.msra.mxu0 %v1108
    %1122 = vmatprep.subr.bf16.mxu0 0
    %1123 = vmatpush1.bf16.xpose.msra.mxu0 %v1107
    %1124 = vmatprep.subr.bf16.mxu0 0
    %1125 = vmatpush1.bf16.xpose.msra.mxu0 %v1106
    %1126 = vmatprep.subr.bf16.mxu0 0
    %1127 = vmatpush1.bf16.xpose.msra.mxu0 %v1105
    %1128 = vmatprep.subr.bf16.mxu0 0
    %1129 = vmatpush1.bf16.xpose.msra.mxu0 %v1104
    %1130 = vmatprep.subr.bf16.mxu0 0
    %1131 = vmatpush1.bf16.xpose.msra.mxu0 %v1103
    %1132 = vmatprep.subr.bf16.mxu0 0
    %1133 = vmatpush1.bf16.xpose.msra.mxu0 %v1102
    %1134 = vmatprep.subr.bf16.mxu0 0
    %1135 = vmatpush2.bf16.xpose.msra.mxu0 0
    %1136 = vmatprep.subr.bf16.mxu0 0
    %1137 = vmatpush2.bf16.xpose.msra.mxu0 0
    %1138 = vmatprep.subr.bf16.mxu0 0
    %1139 = vmatpush2.bf16.xpose.msra.mxu0 0
    %1140 = vmatprep.subr.bf16.mxu0 0
    %1141 = vmatpush2.bf16.xpose.msra.mxu0 0
    %1142 = vmatprep.subr.bf16.mxu0 0
    %1143 = vmatpush2.bf16.xpose.msra.mxu0 0
    %1144 = vmatprep.subr.bf16.mxu0 0
    %1145 = vmatpush2.bf16.xpose.msra.mxu0 0
    %1146 = vmatprep.subr.bf16.mxu0 0
    %1147 = vmatpush2.bf16.xpose.msra.mxu0 0
    %1148 = vmatprep.subr.bf16.mxu0 0
    %1149 = vmatpush2.bf16.xpose.msra.mxu0 0
    %1150 = vmatprep.mubr.bf16.mxu0 0
    %1151 = vmatmul.mubr.bf16.gmra.mxu0 %v888
    %v1152 = vpop.f32.mrf.mxu0
    %v1153 = vadd.f32 0.0, %v1152
    %v1154 = vpop.f32.mrf.mxu0
    %v1155 = vpop.f32.mrf.mxu0
    %v1156 = vpop.f32.mrf.mxu0
    %1157 = vdwg.mxu0
    %v1174 = vunpack.c.l.b16 %v187
    %v1175 = vunpack.c.l.b16 %v188
    %v1176 = vunpack.c.l.b16 %v189
    %v1177 = vunpack.c.l.b16 %v190
    %v1178 = vunpack.c.l.b16 %v191
    %v1179 = vunpack.c.l.b16 %v192
    %v1180 = vunpack.c.l.b16 %v193
    %v1181 = vunpack.c.l.b16 %v194
    %v1182 = vunpack.c.l.b16 %v195
    %v1183 = vunpack.c.l.b16 %v196
    %v1184 = vunpack.c.l.b16 %v197
    %v1185 = vunpack.c.l.b16 %v198
    %v1186 = vunpack.c.l.b16 %v199
    %v1187 = vunpack.c.l.b16 %v200
    %v1188 = vunpack.c.l.b16 %v201
    %v1189 = vunpack.c.l.b16 %v202
    %v1190 = vpack.c.b16 %v1175, %v1174
    %v1191 = vpack.c.b16 %v1177, %v1176
    %v1192 = vpack.c.b16 %v1179, %v1178
    %v1193 = vpack.c.b16 %v1181, %v1180
    %v1194 = vpack.c.b16 %v1183, %v1182
    %v1195 = vpack.c.b16 %v1185, %v1184
    %v1196 = vpack.c.b16 %v1187, %v1186
    %v1197 = vpack.c.b16 %v1189, %v1188
    %1206 = vmatprep.subr.bf16.mxu0 0
    %1207 = vmatpush1.bf16.xpose.msra.mxu0 %v1197
    %1208 = vmatprep.subr.bf16.mxu0 0
    %1209 = vmatpush1.bf16.xpose.msra.mxu0 %v1196
    %1210 = vmatprep.subr.bf16.mxu0 0
    %1211 = vmatpush1.bf16.xpose.msra.mxu0 %v1195
    %1212 = vmatprep.subr.bf16.mxu0 0
    %1213 = vmatpush1.bf16.xpose.msra.mxu0 %v1194
    %1214 = vmatprep.subr.bf16.mxu0 0
    %1215 = vmatpush1.bf16.xpose.msra.mxu0 %v1193
    %1216 = vmatprep.subr.bf16.mxu0 0
    %1217 = vmatpush1.bf16.xpose.msra.mxu0 %v1192
    %1218 = vmatprep.subr.bf16.mxu0 0
    %1219 = vmatpush1.bf16.xpose.msra.mxu0 %v1191
    %1220 = vmatprep.subr.bf16.mxu0 0
    %1221 = vmatpush1.bf16.xpose.msra.mxu0 %v1190
    %1222 = vmatprep.subr.bf16.mxu0 0
    %1223 = vmatpush2.bf16.xpose.msra.mxu0 0
    %1224 = vmatprep.subr.bf16.mxu0 0
    %1225 = vmatpush2.bf16.xpose.msra.mxu0 0
    %1226 = vmatprep.subr.bf16.mxu0 0
    %1227 = vmatpush2.bf16.xpose.msra.mxu0 0
    %1228 = vmatprep.subr.bf16.mxu0 0
    %1229 = vmatpush2.bf16.xpose.msra.mxu0 0
    %1230 = vmatprep.subr.bf16.mxu0 0
    %1231 = vmatpush2.bf16.xpose.msra.mxu0 0
    %1232 = vmatprep.subr.bf16.mxu0 0
    %1233 = vmatpush2.bf16.xpose.msra.mxu0 0
    %1234 = vmatprep.subr.bf16.mxu0 0
    %1235 = vmatpush2.bf16.xpose.msra.mxu0 0
    %1236 = vmatprep.subr.bf16.mxu0 0
    %1237 = vmatpush2.bf16.xpose.msra.mxu0 0
    %1238 = vmatprep.mubr.bf16.mxu0 0
    %1239 = vmatmul.mubr.bf16.gmra.mxu0 %v889
    %v1240 = vpop.f32.mrf.mxu0
    %v1241 = vadd.f32 0.0, %v1240
    %v1242 = vpop.f32.mrf.mxu0
    %v1243 = vpop.f32.mrf.mxu0
    %v1244 = vpop.f32.mrf.mxu0
    %1245 = vdwg.mxu0
    %v1262 = vunpack.c.l.b16 %v203
    %v1263 = vunpack.c.l.b16 %v204
    %v1264 = vunpack.c.l.b16 %v205
    %v1265 = vunpack.c.l.b16 %v206
    %v1266 = vunpack.c.l.b16 %v207
    %v1267 = vunpack.c.l.b16 %v208
    %v1268 = vunpack.c.l.b16 %v209
    %v1269 = vunpack.c.l.b16 %v210
    %v1270 = vunpack.c.l.b16 %v211
    %v1271 = vunpack.c.l.b16 %v212
    %v1272 = vunpack.c.l.b16 %v213
    %v1273 = vunpack.c.l.b16 %v214
    %v1274 = vunpack.c.l.b16 %v215
    %v1275 = vunpack.c.l.b16 %v216
    %v1276 = vunpack.c.l.b16 %v217
    %v1277 = vunpack.c.l.b16 %v218
    %v1278 = vpack.c.b16 %v1263, %v1262
    %v1279 = vpack.c.b16 %v1265, %v1264
    %v1280 = vpack.c.b16 %v1267, %v1266
    %v1281 = vpack.c.b16 %v1269, %v1268
    %v1282 = vpack.c.b16 %v1271, %v1270
    %v1283 = vpack.c.b16 %v1273, %v1272
    %v1284 = vpack.c.b16 %v1275, %v1274
    %v1285 = vpack.c.b16 %v1277, %v1276
    %1294 = vmatprep.subr.bf16.mxu0 0
    %1295 = vmatpush1.bf16.xpose.msra.mxu0 %v1285
    %1296 = vmatprep.subr.bf16.mxu0 0
    %1297 = vmatpush1.bf16.xpose.msra.mxu0 %v1284
    %1298 = vmatprep.subr.bf16.mxu0 0
    %1299 = vmatpush1.bf16.xpose.msra.mxu0 %v1283
    %1300 = vmatprep.subr.bf16.mxu0 0
    %1301 = vmatpush1.bf16.xpose.msra.mxu0 %v1282
    %1302 = vmatprep.subr.bf16.mxu0 0
    %1303 = vmatpush1.bf16.xpose.msra.mxu0 %v1281
    %1304 = vmatprep.subr.bf16.mxu0 0
    %1305 = vmatpush1.bf16.xpose.msra.mxu0 %v1280
    %1306 = vmatprep.subr.bf16.mxu0 0
    %1307 = vmatpush1.bf16.xpose.msra.mxu0 %v1279
    %1308 = vmatprep.subr.bf16.mxu0 0
    %1309 = vmatpush1.bf16.xpose.msra.mxu0 %v1278
    %1310 = vmatprep.subr.bf16.mxu0 0
    %1311 = vmatpush2.bf16.xpose.msra.mxu0 0
    %1312 = vmatprep.subr.bf16.mxu0 0
    %1313 = vmatpush2.bf16.xpose.msra.mxu0 0
    %1314 = vmatprep.subr.bf16.mxu0 0
    %1315 = vmatpush2.bf16.xpose.msra.mxu0 0
    %1316 = vmatprep.subr.bf16.mxu0 0
    %1317 = vmatpush2.bf16.xpose.msra.mxu0 0
    %1318 = vmatprep.subr.bf16.mxu0 0
    %1319 = vmatpush2.bf16.xpose.msra.mxu0 0
    %1320 = vmatprep.subr.bf16.mxu0 0
    %1321 = vmatpush2.bf16.xpose.msra.mxu0 0
    %1322 = vmatprep.subr.bf16.mxu0 0
    %1323 = vmatpush2.bf16.xpose.msra.mxu0 0
    %1324 = vmatprep.subr.bf16.mxu0 0
    %1325 = vmatpush2.bf16.xpose.msra.mxu0 0
    %1326 = vmatprep.mubr.bf16.mxu0 0
    %1327 = vmatmul.mubr.bf16.gmra.mxu0 %v890
    %v1328 = vpop.f32.mrf.mxu0
    %v1329 = vadd.f32 0.0, %v1328
    %v1330 = vpop.f32.mrf.mxu0
    %v1331 = vpop.f32.mrf.mxu0
    %v1332 = vpop.f32.mrf.mxu0
    %1333 = vdwg.mxu0
    %v1350 = vunpack.c.l.b16 %v219
    %v1351 = vunpack.c.l.b16 %v220
    %v1352 = vunpack.c.l.b16 %v221
    %v1353 = vunpack.c.l.b16 %v222
    %v1354 = vunpack.c.l.b16 %v223
    %v1355 = vunpack.c.l.b16 %v224
    %v1356 = vunpack.c.l.b16 %v225
    %v1357 = vunpack.c.l.b16 %v226
    %v1358 = vunpack.c.l.b16 %v227
    %v1359 = vunpack.c.l.b16 %v228
    %v1360 = vunpack.c.l.b16 %v229
    %v1361 = vunpack.c.l.b16 %v230
    %v1362 = vunpack.c.l.b16 %v231
    %v1363 = vunpack.c.l.b16 %v232
    %v1364 = vunpack.c.l.b16 %v233
    %v1365 = vunpack.c.l.b16 %v234
    %v1366 = vpack.c.b16 %v1351, %v1350
    %v1367 = vpack.c.b16 %v1353, %v1352
    %v1368 = vpack.c.b16 %v1355, %v1354
    %v1369 = vpack.c.b16 %v1357, %v1356
    %v1370 = vpack.c.b16 %v1359, %v1358
    %v1371 = vpack.c.b16 %v1361, %v1360
    %v1372 = vpack.c.b16 %v1363, %v1362
    %v1373 = vpack.c.b16 %v1365, %v1364
    %1382 = vmatprep.subr.bf16.mxu0 0
    %1383 = vmatpush1.bf16.xpose.msra.mxu0 %v1373
    %1384 = vmatprep.subr.bf16.mxu0 0
    %1385 = vmatpush1.bf16.xpose.msra.mxu0 %v1372
    %1386 = vmatprep.subr.bf16.mxu0 0
    %1387 = vmatpush1.bf16.xpose.msra.mxu0 %v1371
    %1388 = vmatprep.subr.bf16.mxu0 0
    %1389 = vmatpush1.bf16.xpose.msra.mxu0 %v1370
    %1390 = vmatprep.subr.bf16.mxu0 0
    %1391 = vmatpush1.bf16.xpose.msra.mxu0 %v1369
    %1392 = vmatprep.subr.bf16.mxu0 0
    %1393 = vmatpush1.bf16.xpose.msra.mxu0 %v1368
    %1394 = vmatprep.subr.bf16.mxu0 0
    %1395 = vmatpush1.bf16.xpose.msra.mxu0 %v1367
    %1396 = vmatprep.subr.bf16.mxu0 0
    %1397 = vmatpush1.bf16.xpose.msra.mxu0 %v1366
    %1398 = vmatprep.subr.bf16.mxu0 0
    %1399 = vmatpush2.bf16.xpose.msra.mxu0 0
    %1400 = vmatprep.subr.bf16.mxu0 0
    %1401 = vmatpush2.bf16.xpose.msra.mxu0 0
    %1402 = vmatprep.subr.bf16.mxu0 0
    %1403 = vmatpush2.bf16.xpose.msra.mxu0 0
    %1404 = vmatprep.subr.bf16.mxu0 0
    %1405 = vmatpush2.bf16.xpose.msra.mxu0 0
    %1406 = vmatprep.subr.bf16.mxu0 0
    %1407 = vmatpush2.bf16.xpose.msra.mxu0 0
    %1408 = vmatprep.subr.bf16.mxu0 0
    %1409 = vmatpush2.bf16.xpose.msra.mxu0 0
    %1410 = vmatprep.subr.bf16.mxu0 0
    %1411 = vmatpush2.bf16.xpose.msra.mxu0 0
    %1412 = vmatprep.subr.bf16.mxu0 0
    %1413 = vmatpush2.bf16.xpose.msra.mxu0 0
    %1414 = vmatprep.mubr.bf16.mxu0 0
    %1415 = vmatmul.mubr.bf16.gmra.mxu0 %v891
    %v1416 = vpop.f32.mrf.mxu0
    %v1417 = vadd.f32 0.0, %v1416
    %v1418 = vpop.f32.mrf.mxu0
    %v1419 = vpop.f32.mrf.mxu0
    %v1420 = vpop.f32.mrf.mxu0
    %1421 = vdwg.mxu0
    %v1438 = vunpack.c.l.b16 %v235
    %v1439 = vunpack.c.l.b16 %v236
    %v1440 = vunpack.c.l.b16 %v237
    %v1441 = vunpack.c.l.b16 %v238
    %v1442 = vunpack.c.l.b16 %v239
    %v1443 = vunpack.c.l.b16 %v240
    %v1444 = vunpack.c.l.b16 %v241
    %v1445 = vunpack.c.l.b16 %v242
    %v1446 = vunpack.c.l.b16 %v243
    %v1447 = vunpack.c.l.b16 %v244
    %v1448 = vunpack.c.l.b16 %v245
    %v1449 = vunpack.c.l.b16 %v246
    %v1450 = vunpack.c.l.b16 %v247
    %v1451 = vunpack.c.l.b16 %v248
    %v1452 = vunpack.c.l.b16 %v249
    %v1453 = vunpack.c.l.b16 %v250
    %v1454 = vpack.c.b16 %v1439, %v1438
    %v1455 = vpack.c.b16 %v1441, %v1440
    %v1456 = vpack.c.b16 %v1443, %v1442
    %v1457 = vpack.c.b16 %v1445, %v1444
    %v1458 = vpack.c.b16 %v1447, %v1446
    %v1459 = vpack.c.b16 %v1449, %v1448
    %v1460 = vpack.c.b16 %v1451, %v1450
    %v1461 = vpack.c.b16 %v1453, %v1452
    %1470 = vmatprep.subr.bf16.mxu0 0
    %1471 = vmatpush1.bf16.xpose.msra.mxu0 %v1461
    %1472 = vmatprep.subr.bf16.mxu0 0
    %1473 = vmatpush1.bf16.xpose.msra.mxu0 %v1460
    %1474 = vmatprep.subr.bf16.mxu0 0
    %1475 = vmatpush1.bf16.xpose.msra.mxu0 %v1459
    %1476 = vmatprep.subr.bf16.mxu0 0
    %1477 = vmatpush1.bf16.xpose.msra.mxu0 %v1458
    %1478 = vmatprep.subr.bf16.mxu0 0
    %1479 = vmatpush1.bf16.xpose.msra.mxu0 %v1457
    %1480 = vmatprep.subr.bf16.mxu0 0
    %1481 = vmatpush1.bf16.xpose.msra.mxu0 %v1456
    %1482 = vmatprep.subr.bf16.mxu0 0
    %1483 = vmatpush1.bf16.xpose.msra.mxu0 %v1455
    %1484 = vmatprep.subr.bf16.mxu0 0
    %1485 = vmatpush1.bf16.xpose.msra.mxu0 %v1454
    %1486 = vmatprep.subr.bf16.mxu0 0
    %1487 = vmatpush2.bf16.xpose.msra.mxu0 0
    %1488 = vmatprep.subr.bf16.mxu0 0
    %1489 = vmatpush2.bf16.xpose.msra.mxu0 0
    %1490 = vmatprep.subr.bf16.mxu0 0
    %1491 = vmatpush2.bf16.xpose.msra.mxu0 0
    %1492 = vmatprep.subr.bf16.mxu0 0
    %1493 = vmatpush2.bf16.xpose.msra.mxu0 0
    %1494 = vmatprep.subr.bf16.mxu0 0
    %1495 = vmatpush2.bf16.xpose.msra.mxu0 0
    %1496 = vmatprep.subr.bf16.mxu0 0
    %1497 = vmatpush2.bf16.xpose.msra.mxu0 0
    %1498 = vmatprep.subr.bf16.mxu0 0
    %1499 = vmatpush2.bf16.xpose.msra.mxu0 0
    %1500 = vmatprep.subr.bf16.mxu0 0
    %1501 = vmatpush2.bf16.xpose.msra.mxu0 0
    %1502 = vmatprep.mubr.bf16.mxu0 0
    %1503 = vmatmul.mubr.bf16.gmra.mxu0 %v892
    %v1504 = vpop.f32.mrf.mxu0
    %v1505 = vadd.f32 0.0, %v1504
    %v1506 = vpop.f32.mrf.mxu0
    %v1507 = vpop.f32.mrf.mxu0
    %v1508 = vpop.f32.mrf.mxu0
    %1509 = vdwg.mxu0
    %v1526 = vunpack.c.l.b16 %v251
    %v1527 = vunpack.c.l.b16 %v252
    %v1528 = vunpack.c.l.b16 %v253
    %v1529 = vunpack.c.l.b16 %v254
    %v1530 = vunpack.c.l.b16 %v255
    %v1531 = vunpack.c.l.b16 %v256
    %v1532 = vunpack.c.l.b16 %v257
    %v1533 = vunpack.c.l.b16 %v258
    %v1534 = vunpack.c.l.b16 %v259
    %v1535 = vunpack.c.l.b16 %v260
    %v1536 = vunpack.c.l.b16 %v261
    %v1537 = vunpack.c.l.b16 %v262
    %v1538 = vunpack.c.l.b16 %v263
    %v1539 = vunpack.c.l.b16 %v264
    %v1540 = vunpack.c.l.b16 %v265
    %v1541 = vunpack.c.l.b16 %v266
    %v1542 = vpack.c.b16 %v1527, %v1526
    %v1543 = vpack.c.b16 %v1529, %v1528
    %v1544 = vpack.c.b16 %v1531, %v1530
    %v1545 = vpack.c.b16 %v1533, %v1532
    %v1546 = vpack.c.b16 %v1535, %v1534
    %v1547 = vpack.c.b16 %v1537, %v1536
    %v1548 = vpack.c.b16 %v1539, %v1538
    %v1549 = vpack.c.b16 %v1541, %v1540
    %1558 = vmatprep.subr.bf16.mxu0 0
    %1559 = vmatpush1.bf16.xpose.msra.mxu0 %v1549
    %1560 = vmatprep.subr.bf16.mxu0 0
    %1561 = vmatpush1.bf16.xpose.msra.mxu0 %v1548
    %1562 = vmatprep.subr.bf16.mxu0 0
    %1563 = vmatpush1.bf16.xpose.msra.mxu0 %v1547
    %1564 = vmatprep.subr.bf16.mxu0 0
    %1565 = vmatpush1.bf16.xpose.msra.mxu0 %v1546
    %1566 = vmatprep.subr.bf16.mxu0 0
    %1567 = vmatpush1.bf16.xpose.msra.mxu0 %v1545
    %1568 = vmatprep.subr.bf16.mxu0 0
    %1569 = vmatpush1.bf16.xpose.msra.mxu0 %v1544
    %1570 = vmatprep.subr.bf16.mxu0 0
    %1571 = vmatpush1.bf16.xpose.msra.mxu0 %v1543
    %1572 = vmatprep.subr.bf16.mxu0 0
    %1573 = vmatpush1.bf16.xpose.msra.mxu0 %v1542
    %1574 = vmatprep.subr.bf16.mxu0 0
    %1575 = vmatpush2.bf16.xpose.msra.mxu0 0
    %1576 = vmatprep.subr.bf16.mxu0 0
    %1577 = vmatpush2.bf16.xpose.msra.mxu0 0
    %1578 = vmatprep.subr.bf16.mxu0 0
    %1579 = vmatpush2.bf16.xpose.msra.mxu0 0
    %1580 = vmatprep.subr.bf16.mxu0 0
    %1581 = vmatpush2.bf16.xpose.msra.mxu0 0
    %1582 = vmatprep.subr.bf16.mxu0 0
    %1583 = vmatpush2.bf16.xpose.msra.mxu0 0
    %1584 = vmatprep.subr.bf16.mxu0 0
    %1585 = vmatpush2.bf16.xpose.msra.mxu0 0
    %1586 = vmatprep.subr.bf16.mxu0 0
    %1587 = vmatpush2.bf16.xpose.msra.mxu0 0
    %1588 = vmatprep.subr.bf16.mxu0 0
    %1589 = vmatpush2.bf16.xpose.msra.mxu0 0
    %1590 = vmatprep.mubr.bf16.mxu0 0
    %1591 = vmatmul.mubr.bf16.gmra.mxu0 %v893
    %v1592 = vpop.f32.mrf.mxu0
    %v1593 = vadd.f32 0.0, %v1592
    %v1594 = vpop.f32.mrf.mxu0
    %v1595 = vpop.f32.mrf.mxu0
    %v1596 = vpop.f32.mrf.mxu0
    %1597 = vdwg.mxu0
    %v1598 = vlaneseq
    %v1599 = vand.u32 %v1598, 127
    %vm1600 = vcmp.lt.s32.totalorder %v1599, 8
    %v1601 = vsel %vm1600, 1, 0
    %vm1602 = vcmp.eq.s32.totalorder %v1601, 1
    %v1603 = vsel %vm1602, %v977, -1e+30
    %v1604 = vsel %vm1602, %v1065, -1e+30
    %v1605 = vsel %vm1602, %v1153, -1e+30
    %v1606 = vsel %vm1602, %v1241, -1e+30
    %v1607 = vsel %vm1602, %v1329, -1e+30
    %v1608 = vsel %vm1602, %v1417, -1e+30
    %v1609 = vsel %vm1602, %v1505, -1e+30
    %v1610 = vsel %vm1602, %v1593, -1e+30
    %vm1611 = vcmask 1040384
    %v1612 = vsel %vm1611, %v1603, -inf
    %1613 = vmax.xlane.f32.xlu0 %v1612
    %v1614 = vpop.xlane.xlu0 %1613
    %v1615 = vsel %vm1611, %v1604, -inf
    %1616 = vmax.xlane.f32.xlu0 %v1615
    %v1617 = vpop.xlane.xlu0 %1616
    %v1618 = vsel %vm1611, %v1605, -inf
    %1619 = vmax.xlane.f32.xlu0 %v1618
    %v1620 = vpop.xlane.xlu0 %1619
    %v1621 = vsel %vm1611, %v1606, -inf
    %1622 = vmax.xlane.f32.xlu0 %v1621
    %v1623 = vpop.xlane.xlu0 %1622
    %v1624 = vsel %vm1611, %v1607, -inf
    %1625 = vmax.xlane.f32.xlu0 %v1624
    %v1626 = vpop.xlane.xlu0 %1625
    %v1627 = vsel %vm1611, %v1608, -inf
    %1628 = vmax.xlane.f32.xlu0 %v1627
    %v1629 = vpop.xlane.xlu0 %1628
    %v1630 = vsel %vm1611, %v1609, -inf
    %1631 = vmax.xlane.f32.xlu0 %v1630
    %v1632 = vpop.xlane.xlu0 %1631
    %v1633 = vsel %vm1611, %v1610, -inf
    %1634 = vmax.xlane.f32.xlu0 %v1633
    %v1635 = vpop.xlane.xlu0 %1634
    %v1636 = vsub.f32 %v1603, %v1614
    %v1637 = vsub.f32 %v1604, %v1617
    %v1638 = vsub.f32 %v1605, %v1620
    %v1639 = vsub.f32 %v1606, %v1623
    %v1640 = vsub.f32 %v1607, %v1626
    %v1641 = vsub.f32 %v1608, %v1629
    %v1642 = vsub.f32 %v1609, %v1632
    %v1643 = vsub.f32 %v1610, %v1635
    %v1644 = vmul.f32 %v1636, 1.442695
    %v1645 = vpow.pop %v1644
    %v1646 = vmul.f32 %v1637, 1.442695
    %v1647 = vpow.pop %v1646
    %v1648 = vmul.f32 %v1638, 1.442695
    %v1649 = vpow.pop %v1648
    %v1650 = vmul.f32 %v1639, 1.442695
    %v1651 = vpow.pop %v1650
    %v1652 = vmul.f32 %v1640, 1.442695
    %v1653 = vpow.pop %v1652
    %v1654 = vmul.f32 %v1641, 1.442695
    %v1655 = vpow.pop %v1654
    %v1656 = vmul.f32 %v1642, 1.442695
    %v1657 = vpow.pop %v1656
    %v1658 = vmul.f32 %v1643, 1.442695
    %v1659 = vpow.pop %v1658
    %v1660 = vsel %vm1611, %v1645, 0.0
    %1661 = vadd.xlane.f32.xlu0 %v1660
    %v1662 = vpop.xlane.xlu0 %1661
    %v1663 = vsel %vm1611, %v1647, 0.0
    %1664 = vadd.xlane.f32.xlu0 %v1663
    %v1665 = vpop.xlane.xlu0 %1664
    %v1666 = vsel %vm1611, %v1649, 0.0
    %1667 = vadd.xlane.f32.xlu0 %v1666
    %v1668 = vpop.xlane.xlu0 %1667
    %v1669 = vsel %vm1611, %v1651, 0.0
    %1670 = vadd.xlane.f32.xlu0 %v1669
    %v1671 = vpop.xlane.xlu0 %1670
    %v1672 = vsel %vm1611, %v1653, 0.0
    %1673 = vadd.xlane.f32.xlu0 %v1672
    %v1674 = vpop.xlane.xlu0 %1673
    %v1675 = vsel %vm1611, %v1655, 0.0
    %1676 = vadd.xlane.f32.xlu0 %v1675
    %v1677 = vpop.xlane.xlu0 %1676
    %v1678 = vsel %vm1611, %v1657, 0.0
    %1679 = vadd.xlane.f32.xlu0 %v1678
    %v1680 = vpop.xlane.xlu0 %1679
    %v1681 = vsel %vm1611, %v1659, 0.0
    %1682 = vadd.xlane.f32.xlu0 %v1681
    %v1683 = vpop.xlane.xlu0 %1682
    %v1684 = vrcp.pop %v1662
    %v1685 = vmul.f32 %v1645, %v1684
    %v1686 = vrcp.pop %v1665
    %v1687 = vmul.f32 %v1647, %v1686
    %v1688 = vrcp.pop %v1668
    %v1689 = vmul.f32 %v1649, %v1688
    %v1690 = vrcp.pop %v1671
    %v1691 = vmul.f32 %v1651, %v1690
    %v1692 = vrcp.pop %v1674
    %v1693 = vmul.f32 %v1653, %v1692
    %v1694 = vrcp.pop %v1677
    %v1695 = vmul.f32 %v1655, %v1694
    %v1696 = vrcp.pop %v1680
    %v1697 = vmul.f32 %v1657, %v1696
    %v1698 = vrcp.pop %v1683
    %v1699 = vmul.f32 %v1659, %v1698
    %v1700 = vpack.c.bf16 %v1685, %v1685
    %v1701 = vpack.c.bf16 %v1687, %v1687
    %v1702 = vpack.c.bf16 %v1689, %v1689
    %v1703 = vpack.c.bf16 %v1691, %v1691
    %v1704 = vpack.c.bf16 %v1693, %v1693
    %v1705 = vpack.c.bf16 %v1695, %v1695
    %v1706 = vpack.c.bf16 %v1697, %v1697
    %v1707 = vpack.c.bf16 %v1699, %v1699
    %1708 = vmatprep.subr.bf16.mxu0 0
    %1709 = vmatpush1.bf16.msra.mxu0 %v933
    %1710 = vmatprep.subr.bf16.mxu0 0
    %1711 = vmatpush1.bf16.msra.mxu0 %v932
    %1712 = vmatprep.subr.bf16.mxu0 0
    %1713 = vmatpush1.bf16.msra.mxu0 %v931
    %1714 = vmatprep.subr.bf16.mxu0 0
    %1715 = vmatpush1.bf16.msra.mxu0 %v930
    %1716 = vmatprep.subr.bf16.mxu0 0
    %1717 = vmatpush1.bf16.msra.mxu0 %v929
    %1718 = vmatprep.subr.bf16.mxu0 0
    %1719 = vmatpush1.bf16.msra.mxu0 %v928
    %1720 = vmatprep.subr.bf16.mxu0 0
    %1721 = vmatpush1.bf16.msra.mxu0 %v927
    %1722 = vmatprep.subr.bf16.mxu0 0
    %1723 = vmatpush1.bf16.msra.mxu0 %v926
    %1724 = vmatprep.subr.bf16.mxu0 0
    %1725 = vmatpush2.bf16.msra.mxu0 0
    %1726 = vmatprep.subr.bf16.mxu0 0
    %1727 = vmatpush2.bf16.msra.mxu0 0
    %1728 = vmatprep.subr.bf16.mxu0 0
    %1729 = vmatpush2.bf16.msra.mxu0 0
    %1730 = vmatprep.subr.bf16.mxu0 0
    %1731 = vmatpush2.bf16.msra.mxu0 0
    %1732 = vmatprep.subr.bf16.mxu0 0
    %1733 = vmatpush2.bf16.msra.mxu0 0
    %1734 = vmatprep.subr.bf16.mxu0 0
    %1735 = vmatpush2.bf16.msra.mxu0 0
    %1736 = vmatprep.subr.bf16.mxu0 0
    %1737 = vmatpush2.bf16.msra.mxu0 0
    %1738 = vmatprep.subr.bf16.mxu0 0
    %1739 = vmatpush2.bf16.msra.mxu0 0
    %1740 = vmatprep.mubr.bf16.mxu0 0
    %1741 = vmatmul.mubr.bf16.gmra.mxu0 %v1700
    %v1742 = vpop.f32.mrf.mxu0
    %v1743 = vadd.f32 0.0, %v1742
    %v1744 = vpop.f32.mrf.mxu0
    %v1745 = vpop.f32.mrf.mxu0
    %v1746 = vpop.f32.mrf.mxu0
    %1747 = vdwg.mxu0
    %1748 = vmatprep.subr.bf16.mxu0 0
    %1749 = vmatpush1.bf16.msra.mxu0 %v1021
    %1750 = vmatprep.subr.bf16.mxu0 0
    %1751 = vmatpush1.bf16.msra.mxu0 %v1020
    %1752 = vmatprep.subr.bf16.mxu0 0
    %1753 = vmatpush1.bf16.msra.mxu0 %v1019
    %1754 = vmatprep.subr.bf16.mxu0 0
    %1755 = vmatpush1.bf16.msra.mxu0 %v1018
    %1756 = vmatprep.subr.bf16.mxu0 0
    %1757 = vmatpush1.bf16.msra.mxu0 %v1017
    %1758 = vmatprep.subr.bf16.mxu0 0
    %1759 = vmatpush1.bf16.msra.mxu0 %v1016
    %1760 = vmatprep.subr.bf16.mxu0 0
    %1761 = vmatpush1.bf16.msra.mxu0 %v1015
    %1762 = vmatprep.subr.bf16.mxu0 0
    %1763 = vmatpush1.bf16.msra.mxu0 %v1014
    %1764 = vmatprep.subr.bf16.mxu0 0
    %1765 = vmatpush2.bf16.msra.mxu0 0
    %1766 = vmatprep.subr.bf16.mxu0 0
    %1767 = vmatpush2.bf16.msra.mxu0 0
    %1768 = vmatprep.subr.bf16.mxu0 0
    %1769 = vmatpush2.bf16.msra.mxu0 0
    %1770 = vmatprep.subr.bf16.mxu0 0
    %1771 = vmatpush2.bf16.msra.mxu0 0
    %1772 = vmatprep.subr.bf16.mxu0 0
    %1773 = vmatpush2.bf16.msra.mxu0 0
    %1774 = vmatprep.subr.bf16.mxu0 0
    %1775 = vmatpush2.bf16.msra.mxu0 0
    %1776 = vmatprep.subr.bf16.mxu0 0
    %1777 = vmatpush2.bf16.msra.mxu0 0
    %1778 = vmatprep.subr.bf16.mxu0 0
    %1779 = vmatpush2.bf16.msra.mxu0 0
    %1780 = vmatprep.mubr.bf16.mxu0 0
    %1781 = vmatmul.mubr.bf16.gmra.mxu0 %v1701
    %v1782 = vpop.f32.mrf.mxu0
    %v1783 = vadd.f32 0.0, %v1782
    %v1784 = vpop.f32.mrf.mxu0
    %v1785 = vpop.f32.mrf.mxu0
    %v1786 = vpop.f32.mrf.mxu0
    %1787 = vdwg.mxu0
    %1788 = vmatprep.subr.bf16.mxu0 0
    %1789 = vmatpush1.bf16.msra.mxu0 %v1109
    %1790 = vmatprep.subr.bf16.mxu0 0
    %1791 = vmatpush1.bf16.msra.mxu0 %v1108
    %1792 = vmatprep.subr.bf16.mxu0 0
    %1793 = vmatpush1.bf16.msra.mxu0 %v1107
    %1794 = vmatprep.subr.bf16.mxu0 0
    %1795 = vmatpush1.bf16.msra.mxu0 %v1106
    %1796 = vmatprep.subr.bf16.mxu0 0
    %1797 = vmatpush1.bf16.msra.mxu0 %v1105
    %1798 = vmatprep.subr.bf16.mxu0 0
    %1799 = vmatpush1.bf16.msra.mxu0 %v1104
    %1800 = vmatprep.subr.bf16.mxu0 0
    %1801 = vmatpush1.bf16.msra.mxu0 %v1103
    %1802 = vmatprep.subr.bf16.mxu0 0
    %1803 = vmatpush1.bf16.msra.mxu0 %v1102
    %1804 = vmatprep.subr.bf16.mxu0 0
    %1805 = vmatpush2.bf16.msra.mxu0 0
    %1806 = vmatprep.subr.bf16.mxu0 0
    %1807 = vmatpush2.bf16.msra.mxu0 0
    %1808 = vmatprep.subr.bf16.mxu0 0
    %1809 = vmatpush2.bf16.msra.mxu0 0
    %1810 = vmatprep.subr.bf16.mxu0 0
    %1811 = vmatpush2.bf16.msra.mxu0 0
    %1812 = vmatprep.subr.bf16.mxu0 0
    %1813 = vmatpush2.bf16.msra.mxu0 0
    %1814 = vmatprep.subr.bf16.mxu0 0
    %1815 = vmatpush2.bf16.msra.mxu0 0
    %1816 = vmatprep.subr.bf16.mxu0 0
    %1817 = vmatpush2.bf16.msra.mxu0 0
    %1818 = vmatprep.subr.bf16.mxu0 0
    %1819 = vmatpush2.bf16.msra.mxu0 0
    %1820 = vmatprep.mubr.bf16.mxu0 0
    %1821 = vmatmul.mubr.bf16.gmra.mxu0 %v1702
    %v1822 = vpop.f32.mrf.mxu0
    %v1823 = vadd.f32 0.0, %v1822
    %v1824 = vpop.f32.mrf.mxu0
    %v1825 = vpop.f32.mrf.mxu0
    %v1826 = vpop.f32.mrf.mxu0
    %1827 = vdwg.mxu0
    %1828 = vmatprep.subr.bf16.mxu0 0
    %1829 = vmatpush1.bf16.msra.mxu0 %v1197
    %1830 = vmatprep.subr.bf16.mxu0 0
    %1831 = vmatpush1.bf16.msra.mxu0 %v1196
    %1832 = vmatprep.subr.bf16.mxu0 0
    %1833 = vmatpush1.bf16.msra.mxu0 %v1195
    %1834 = vmatprep.subr.bf16.mxu0 0
    %1835 = vmatpush1.bf16.msra.mxu0 %v1194
    %1836 = vmatprep.subr.bf16.mxu0 0
    %1837 = vmatpush1.bf16.msra.mxu0 %v1193
    %1838 = vmatprep.subr.bf16.mxu0 0
    %1839 = vmatpush1.bf16.msra.mxu0 %v1192
    %1840 = vmatprep.subr.bf16.mxu0 0
    %1841 = vmatpush1.bf16.msra.mxu0 %v1191
    %1842 = vmatprep.subr.bf16.mxu0 0
    %1843 = vmatpush1.bf16.msra.mxu0 %v1190
    %1844 = vmatprep.subr.bf16.mxu0 0
    %1845 = vmatpush2.bf16.msra.mxu0 0
    %1846 = vmatprep.subr.bf16.mxu0 0
    %1847 = vmatpush2.bf16.msra.mxu0 0
    %1848 = vmatprep.subr.bf16.mxu0 0
    %1849 = vmatpush2.bf16.msra.mxu0 0
    %1850 = vmatprep.subr.bf16.mxu0 0
    %1851 = vmatpush2.bf16.msra.mxu0 0
    %1852 = vmatprep.subr.bf16.mxu0 0
    %1853 = vmatpush2.bf16.msra.mxu0 0
    %1854 = vmatprep.subr.bf16.mxu0 0
    %1855 = vmatpush2.bf16.msra.mxu0 0
    %1856 = vmatprep.subr.bf16.mxu0 0
    %1857 = vmatpush2.bf16.msra.mxu0 0
    %1858 = vmatprep.subr.bf16.mxu0 0
    %1859 = vmatpush2.bf16.msra.mxu0 0
    %1860 = vmatprep.mubr.bf16.mxu0 0
    %1861 = vmatmul.mubr.bf16.gmra.mxu0 %v1703
    %v1862 = vpop.f32.mrf.mxu0
    %v1863 = vadd.f32 0.0, %v1862
    %v1864 = vpop.f32.mrf.mxu0
    %v1865 = vpop.f32.mrf.mxu0
    %v1866 = vpop.f32.mrf.mxu0
    %1867 = vdwg.mxu0
    %1868 = vmatprep.subr.bf16.mxu0 0
    %1869 = vmatpush1.bf16.msra.mxu0 %v1285
    %1870 = vmatprep.subr.bf16.mxu0 0
    %1871 = vmatpush1.bf16.msra.mxu0 %v1284
    %1872 = vmatprep.subr.bf16.mxu0 0
    %1873 = vmatpush1.bf16.msra.mxu0 %v1283
    %1874 = vmatprep.subr.bf16.mxu0 0
    %1875 = vmatpush1.bf16.msra.mxu0 %v1282
    %1876 = vmatprep.subr.bf16.mxu0 0
    %1877 = vmatpush1.bf16.msra.mxu0 %v1281
    %1878 = vmatprep.subr.bf16.mxu0 0
    %1879 = vmatpush1.bf16.msra.mxu0 %v1280
    %1880 = vmatprep.subr.bf16.mxu0 0
    %1881 = vmatpush1.bf16.msra.mxu0 %v1279
    %1882 = vmatprep.subr.bf16.mxu0 0
    %1883 = vmatpush1.bf16.msra.mxu0 %v1278
    %1884 = vmatprep.subr.bf16.mxu0 0
    %1885 = vmatpush2.bf16.msra.mxu0 0
    %1886 = vmatprep.subr.bf16.mxu0 0
    %1887 = vmatpush2.bf16.msra.mxu0 0
    %1888 = vmatprep.subr.bf16.mxu0 0
    %1889 = vmatpush2.bf16.msra.mxu0 0
    %1890 = vmatprep.subr.bf16.mxu0 0
    %1891 = vmatpush2.bf16.msra.mxu0 0
    %1892 = vmatprep.subr.bf16.mxu0 0
    %1893 = vmatpush2.bf16.msra.mxu0 0
    %1894 = vmatprep.subr.bf16.mxu0 0
    %1895 = vmatpush2.bf16.msra.mxu0 0
    %1896 = vmatprep.subr.bf16.mxu0 0
    %1897 = vmatpush2.bf16.msra.mxu0 0
    %1898 = vmatprep.subr.bf16.mxu0 0
    %1899 = vmatpush2.bf16.msra.mxu0 0
    %1900 = vmatprep.mubr.bf16.mxu0 0
    %1901 = vmatmul.mubr.bf16.gmra.mxu0 %v1704
    %v1902 = vpop.f32.mrf.mxu0
    %v1903 = vadd.f32 0.0, %v1902
    %v1904 = vpop.f32.mrf.mxu0
    %v1905 = vpop.f32.mrf.mxu0
    %v1906 = vpop.f32.mrf.mxu0
    %1907 = vdwg.mxu0
    %1908 = vmatprep.subr.bf16.mxu0 0
    %1909 = vmatpush1.bf16.msra.mxu0 %v1373
    %1910 = vmatprep.subr.bf16.mxu0 0
    %1911 = vmatpush1.bf16.msra.mxu0 %v1372
    %1912 = vmatprep.subr.bf16.mxu0 0
    %1913 = vmatpush1.bf16.msra.mxu0 %v1371
    %1914 = vmatprep.subr.bf16.mxu0 0
    %1915 = vmatpush1.bf16.msra.mxu0 %v1370
    %1916 = vmatprep.subr.bf16.mxu0 0
    %1917 = vmatpush1.bf16.msra.mxu0 %v1369
    %1918 = vmatprep.subr.bf16.mxu0 0
    %1919 = vmatpush1.bf16.msra.mxu0 %v1368
    %1920 = vmatprep.subr.bf16.mxu0 0
    %1921 = vmatpush1.bf16.msra.mxu0 %v1367
    %1922 = vmatprep.subr.bf16.mxu0 0
    %1923 = vmatpush1.bf16.msra.mxu0 %v1366
    %1924 = vmatprep.subr.bf16.mxu0 0
    %1925 = vmatpush2.bf16.msra.mxu0 0
    %1926 = vmatprep.subr.bf16.mxu0 0
    %1927 = vmatpush2.bf16.msra.mxu0 0
    %1928 = vmatprep.subr.bf16.mxu0 0
    %1929 = vmatpush2.bf16.msra.mxu0 0
    %1930 = vmatprep.subr.bf16.mxu0 0
    %1931 = vmatpush2.bf16.msra.mxu0 0
    %1932 = vmatprep.subr.bf16.mxu0 0
    %1933 = vmatpush2.bf16.msra.mxu0 0
    %1934 = vmatprep.subr.bf16.mxu0 0
    %1935 = vmatpush2.bf16.msra.mxu0 0
    %1936 = vmatprep.subr.bf16.mxu0 0
    %1937 = vmatpush2.bf16.msra.mxu0 0
    %1938 = vmatprep.subr.bf16.mxu0 0
    %1939 = vmatpush2.bf16.msra.mxu0 0
    %1940 = vmatprep.mubr.bf16.mxu0 0
    %1941 = vmatmul.mubr.bf16.gmra.mxu0 %v1705
    %v1942 = vpop.f32.mrf.mxu0
    %v1943 = vadd.f32 0.0, %v1942
    %v1944 = vpop.f32.mrf.mxu0
    %v1945 = vpop.f32.mrf.mxu0
    %v1946 = vpop.f32.mrf.mxu0
    %1947 = vdwg.mxu0
    %1948 = vmatprep.subr.bf16.mxu0 0
    %1949 = vmatpush1.bf16.msra.mxu0 %v1461
    %1950 = vmatprep.subr.bf16.mxu0 0
    %1951 = vmatpush1.bf16.msra.mxu0 %v1460
    %1952 = vmatprep.subr.bf16.mxu0 0
    %1953 = vmatpush1.bf16.msra.mxu0 %v1459
    %1954 = vmatprep.subr.bf16.mxu0 0
    %1955 = vmatpush1.bf16.msra.mxu0 %v1458
    %1956 = vmatprep.subr.bf16.mxu0 0
    %1957 = vmatpush1.bf16.msra.mxu0 %v1457
    %1958 = vmatprep.subr.bf16.mxu0 0
    %1959 = vmatpush1.bf16.msra.mxu0 %v1456
    %1960 = vmatprep.subr.bf16.mxu0 0
    %1961 = vmatpush1.bf16.msra.mxu0 %v1455
    %1962 = vmatprep.subr.bf16.mxu0 0
    %1963 = vmatpush1.bf16.msra.mxu0 %v1454
    %1964 = vmatprep.subr.bf16.mxu0 0
    %1965 = vmatpush2.bf16.msra.mxu0 0
    %1966 = vmatprep.subr.bf16.mxu0 0
    %1967 = vmatpush2.bf16.msra.mxu0 0
    %1968 = vmatprep.subr.bf16.mxu0 0
    %1969 = vmatpush2.bf16.msra.mxu0 0
    %1970 = vmatprep.subr.bf16.mxu0 0
    %1971 = vmatpush2.bf16.msra.mxu0 0
    %1972 = vmatprep.subr.bf16.mxu0 0
    %1973 = vmatpush2.bf16.msra.mxu0 0
    %1974 = vmatprep.subr.bf16.mxu0 0
    %1975 = vmatpush2.bf16.msra.mxu0 0
    %1976 = vmatprep.subr.bf16.mxu0 0
    %1977 = vmatpush2.bf16.msra.mxu0 0
    %1978 = vmatprep.subr.bf16.mxu0 0
    %1979 = vmatpush2.bf16.msra.mxu0 0
    %1980 = vmatprep.mubr.bf16.mxu0 0
    %1981 = vmatmul.mubr.bf16.gmra.mxu0 %v1706
    %v1982 = vpop.f32.mrf.mxu0
    %v1983 = vadd.f32 0.0, %v1982
    %v1984 = vpop.f32.mrf.mxu0
    %v1985 = vpop.f32.mrf.mxu0
    %v1986 = vpop.f32.mrf.mxu0
    %1987 = vdwg.mxu0
    %1988 = vmatprep.subr.bf16.mxu0 0
    %1989 = vmatpush1.bf16.msra.mxu0 %v1549
    %1990 = vmatprep.subr.bf16.mxu0 0
    %1991 = vmatpush1.bf16.msra.mxu0 %v1548
    %1992 = vmatprep.subr.bf16.mxu0 0
    %1993 = vmatpush1.bf16.msra.mxu0 %v1547
    %1994 = vmatprep.subr.bf16.mxu0 0
    %1995 = vmatpush1.bf16.msra.mxu0 %v1546
    %1996 = vmatprep.subr.bf16.mxu0 0
    %1997 = vmatpush1.bf16.msra.mxu0 %v1545
    %1998 = vmatprep.subr.bf16.mxu0 0
    %1999 = vmatpush1.bf16.msra.mxu0 %v1544
    %2000 = vmatprep.subr.bf16.mxu0 0
    %2001 = vmatpush1.bf16.msra.mxu0 %v1543
    %2002 = vmatprep.subr.bf16.mxu0 0
    %2003 = vmatpush1.bf16.msra.mxu0 %v1542
    %2004 = vmatprep.subr.bf16.mxu0 0
    %2005 = vmatpush2.bf16.msra.mxu0 0
    %2006 = vmatprep.subr.bf16.mxu0 0
    %2007 = vmatpush2.bf16.msra.mxu0 0
    %2008 = vmatprep.subr.bf16.mxu0 0
    %2009 = vmatpush2.bf16.msra.mxu0 0
    %2010 = vmatprep.subr.bf16.mxu0 0
    %2011 = vmatpush2.bf16.msra.mxu0 0
    %2012 = vmatprep.subr.bf16.mxu0 0
    %2013 = vmatpush2.bf16.msra.mxu0 0
    %2014 = vmatprep.subr.bf16.mxu0 0
    %2015 = vmatpush2.bf16.msra.mxu0 0
    %2016 = vmatprep.subr.bf16.mxu0 0
    %2017 = vmatpush2.bf16.msra.mxu0 0
    %2018 = vmatprep.subr.bf16.mxu0 0
    %2019 = vmatpush2.bf16.msra.mxu0 0
    %2020 = vmatprep.mubr.bf16.mxu0 0
    %2021 = vmatmul.mubr.bf16.gmra.mxu0 %v1707
    %v2022 = vpop.f32.mrf.mxu0
    %v2023 = vadd.f32 0.0, %v2022
    %v2024 = vpop.f32.mrf.mxu0
    %v2025 = vpop.f32.mrf.mxu0
    %v2026 = vpop.f32.mrf.mxu0
    %2027 = vdwg.mxu0
    %v2036 = vrot.slane %v1783, 7
    %vm2037 = vcmask 1041409
    %v2038 = vsel %vm2037, %v2036, %v1743
    %v2039 = vrot.slane %v1823, 6
    %vm2040 = vcmask 1042434
    %v2041 = vsel %vm2040, %v2039, %v2038
    %v2042 = vrot.slane %v1863, 5
    %vm2043 = vcmask 1043459
    %v2044 = vsel %vm2043, %v2042, %v2041
    %v2045 = vrot.slane %v1903, 4
    %vm2046 = vcmask 1044484
    %v2047 = vsel %vm2046, %v2045, %v2044
    %v2048 = vrot.slane %v1943, 3
    %vm2049 = vcmask 1045509
    %v2050 = vsel %vm2049, %v2048, %v2047
    %v2051 = vrot.slane %v1983, 2
    %vm2052 = vcmask 1046534
    %v2053 = vsel %vm2052, %v2051, %v2050
    %v2054 = vrot.slane %v2023, 1
    %vm2055 = vcmask 1047559
    %v2056 = vsel %vm2055, %v2054, %v2053
    %v2058 = vpack.c.bf16 %v827, %v827
    %v2059 = vpack.c.bf16 %v2056, %v2056
    %v2060 = vld [vmem:[#allocation12] sm:$0xf]
    %v2061 = vld [vmem:[#allocation12 + $0x4] sm:$0xf]
    %v2062 = vld [vmem:[#allocation12 + $0x8] sm:$0xf]
    %v2063 = vld [vmem:[#allocation12 + $0xc] sm:$0xf]
    %v2064 = vld [vmem:[#allocation12 + $0x10] sm:$0xf]
    %v2065 = vld [vmem:[#allocation12 + $0x14] sm:$0xf]
    %v2066 = vld [vmem:[#allocation12 + $0x18] sm:$0xf]
    %v2067 = vld [vmem:[#allocation12 + $0x1c] sm:$0xf]
    %v2068 = vld [vmem:[#allocation12 + $0x20] sm:$0xf]
    %v2069 = vld [vmem:[#allocation12 + $0x24] sm:$0xf]
    %v2070 = vld [vmem:[#allocation12 + $0x28] sm:$0xf]
    %v2071 = vld [vmem:[#allocation12 + $0x2c] sm:$0xf]
    %v2072 = vld [vmem:[#allocation12 + $0x30] sm:$0xf]
    %v2073 = vld [vmem:[#allocation12 + $0x34] sm:$0xf]
    %v2074 = vld [vmem:[#allocation12 + $0x38] sm:$0xf]
    %v2075 = vld [vmem:[#allocation12 + $0x3c] sm:$0xf]
    %v2076 = vld [vmem:[#allocation12 + $0x40] sm:$0xf]
    %v2077 = vld [vmem:[#allocation12 + $0x44] sm:$0xf]
    %v2078 = vld [vmem:[#allocation12 + $0x48] sm:$0xf]
    %v2079 = vld [vmem:[#allocation12 + $0x4c] sm:$0xf]
    %v2080 = vld [vmem:[#allocation12 + $0x50] sm:$0xf]
    %v2081 = vld [vmem:[#allocation12 + $0x54] sm:$0xf]
    %v2082 = vld [vmem:[#allocation12 + $0x58] sm:$0xf]
    %v2083 = vld [vmem:[#allocation12 + $0x5c] sm:$0xf]
    %v2084 = vld [vmem:[#allocation12 + $0x60] sm:$0xf]
    %v2085 = vld [vmem:[#allocation12 + $0x64] sm:$0xf]
    %v2086 = vld [vmem:[#allocation12 + $0x68] sm:$0xf]
    %v2087 = vld [vmem:[#allocation12 + $0x6c] sm:$0xf]
    %v2088 = vld [vmem:[#allocation12 + $0x70] sm:$0xf]
    %v2089 = vld [vmem:[#allocation12 + $0x74] sm:$0xf]
    %v2090 = vld [vmem:[#allocation12 + $0x78] sm:$0xf]
    %v2091 = vld [vmem:[#allocation12 + $0x7c] sm:$0xf]
    %v2092 = vld [vmem:[%s7] sm:$0x1]
    %v2094 = vlaneseq
    %v2095 = vshrl.u32 %v2094, 7
    %v2096 = vsub.s32 0, %v2095
    %v2097 = vrot.slane %v2092, %v2096
    %v2131 = vunpack.c.l.b16 %v2060
    %v2132 = vunpack.c.l.b16 %v2061
    %v2133 = vunpack.c.l.b16 %v2062
    %v2134 = vunpack.c.l.b16 %v2063
    %v2135 = vunpack.c.l.b16 %v2064
    %v2136 = vunpack.c.l.b16 %v2065
    %v2137 = vunpack.c.l.b16 %v2066
    %v2138 = vunpack.c.l.b16 %v2067
    %v2139 = vunpack.c.l.b16 %v2068
    %v2140 = vunpack.c.l.b16 %v2069
    %v2141 = vunpack.c.l.b16 %v2070
    %v2142 = vunpack.c.l.b16 %v2071
    %v2143 = vunpack.c.l.b16 %v2072
    %v2144 = vunpack.c.l.b16 %v2073
    %v2145 = vunpack.c.l.b16 %v2074
    %v2146 = vunpack.c.l.b16 %v2075
    %v2147 = vunpack.c.l.b16 %v2076
    %v2148 = vunpack.c.l.b16 %v2077
    %v2149 = vunpack.c.l.b16 %v2078
    %v2150 = vunpack.c.l.b16 %v2079
    %v2151 = vunpack.c.l.b16 %v2080
    %v2152 = vunpack.c.l.b16 %v2081
    %v2153 = vunpack.c.l.b16 %v2082
    %v2154 = vunpack.c.l.b16 %v2083
    %v2155 = vunpack.c.l.b16 %v2084
    %v2156 = vunpack.c.l.b16 %v2085
    %v2157 = vunpack.c.l.b16 %v2086
    %v2158 = vunpack.c.l.b16 %v2087
    %v2159 = vunpack.c.l.b16 %v2088
    %v2160 = vunpack.c.l.b16 %v2089
    %v2161 = vunpack.c.l.b16 %v2090
    %v2162 = vunpack.c.l.b16 %v2091
    %v2163 = vpack.c.b16 %v2132, %v2131
    %v2164 = vpack.c.b16 %v2134, %v2133
    %v2165 = vpack.c.b16 %v2136, %v2135
    %v2166 = vpack.c.b16 %v2138, %v2137
    %v2167 = vpack.c.b16 %v2140, %v2139
    %v2168 = vpack.c.b16 %v2142, %v2141
    %v2169 = vpack.c.b16 %v2144, %v2143
    %v2170 = vpack.c.b16 %v2146, %v2145
    %v2171 = vpack.c.b16 %v2148, %v2147
    %v2172 = vpack.c.b16 %v2150, %v2149
    %v2173 = vpack.c.b16 %v2152, %v2151
    %v2174 = vpack.c.b16 %v2154, %v2153
    %v2175 = vpack.c.b16 %v2156, %v2155
    %v2176 = vpack.c.b16 %v2158, %v2157
    %v2177 = vpack.c.b16 %v2160, %v2159
    %v2178 = vpack.c.b16 %v2162, %v2161
    %2195 = vmatprep.subr.bf16.mxu0 0
    %2196 = vmatpush1.bf16.msra.mxu0 %v2170
    %2197 = vmatprep.subr.bf16.mxu0 0
    %2198 = vmatpush1.bf16.msra.mxu0 %v2169
    %2199 = vmatprep.subr.bf16.mxu0 0
    %2200 = vmatpush1.bf16.msra.mxu0 %v2168
    %2201 = vmatprep.subr.bf16.mxu0 0
    %2202 = vmatpush1.bf16.msra.mxu0 %v2167
    %2203 = vmatprep.subr.bf16.mxu0 0
    %2204 = vmatpush1.bf16.msra.mxu0 %v2166
    %2205 = vmatprep.subr.bf16.mxu0 0
    %2206 = vmatpush1.bf16.msra.mxu0 %v2165
    %2207 = vmatprep.subr.bf16.mxu0 0
    %2208 = vmatpush1.bf16.msra.mxu0 %v2164
    %2209 = vmatprep.subr.bf16.mxu0 0
    %2210 = vmatpush1.bf16.msra.mxu0 %v2163
    %2211 = vmatprep.subr.bf16.mxu0 0
    %2212 = vmatpush2.bf16.msra.mxu0 %v2178
    %2213 = vmatprep.subr.bf16.mxu0 0
    %2214 = vmatpush2.bf16.msra.mxu0 %v2177
    %2215 = vmatprep.subr.bf16.mxu0 0
    %2216 = vmatpush2.bf16.msra.mxu0 %v2176
    %2217 = vmatprep.subr.bf16.mxu0 0
    %2218 = vmatpush2.bf16.msra.mxu0 %v2175
    %2219 = vmatprep.subr.bf16.mxu0 0
    %2220 = vmatpush2.bf16.msra.mxu0 %v2174
    %2221 = vmatprep.subr.bf16.mxu0 0
    %2222 = vmatpush2.bf16.msra.mxu0 %v2173
    %2223 = vmatprep.subr.bf16.mxu0 0
    %2224 = vmatpush2.bf16.msra.mxu0 %v2172
    %2225 = vmatprep.subr.bf16.mxu0 0
    %2226 = vmatpush2.bf16.msra.mxu0 %v2171
    %2227 = vmatprep.mubr.bf16.mxu0 %v2059
    %2228 = vmatmul.mubr.bf16.gmra.mxu0 %v2058
    %v2229 = vpop.f32.mrf.mxu0
    %v2230 = vadd.f32 %v2097, %v2229
    %v2231 = vpop.f32.mrf.mxu0
    %v2232 = vpop.f32.mrf.mxu0
    %v2233 = vpop.f32.mrf.mxu0
    %2234 = vdwg.mxu0
    %v2235 = vtanh.pop %v2230
    %v2236 = vpack.c.bf16 %v2235, %v2235
    %v2237 = vld [vmem:[#allocation14] sm:$0xf]
    %v2238 = vld [vmem:[#allocation14 + $0x4] sm:$0xf]
    %v2239 = vld [vmem:[#allocation14 + $0x8] sm:$0xf]
    %v2240 = vld [vmem:[#allocation14 + $0xc] sm:$0xf]
    %v2241 = vld [vmem:[#allocation14 + $0x10] sm:$0xf]
    %v2242 = vld [vmem:[#allocation14 + $0x14] sm:$0xf]
    %v2243 = vld [vmem:[#allocation14 + $0x18] sm:$0xf]
    %v2244 = vld [vmem:[#allocation14 + $0x1c] sm:$0xf]
    %v2245 = vld [vmem:[#allocation14 + $0x20] sm:$0xf]
    %v2246 = vld [vmem:[#allocation14 + $0x24] sm:$0xf]
    %v2247 = vld [vmem:[#allocation14 + $0x28] sm:$0xf]
    %v2248 = vld [vmem:[#allocation14 + $0x2c] sm:$0xf]
    %v2249 = vld [vmem:[#allocation14 + $0x30] sm:$0xf]
    %v2250 = vld [vmem:[#allocation14 + $0x34] sm:$0xf]
    %v2251 = vld [vmem:[#allocation14 + $0x38] sm:$0xf]
    %v2252 = vld [vmem:[#allocation14 + $0x3c] sm:$0xf]
    %v2253 = vld [vmem:[%s9] sm:$0x1]
    %v2255 = vlaneseq
    %v2256 = vshrl.u32 %v2255, 7
    %v2257 = vsub.s32 0, %v2256
    %v2258 = vrot.slane %v2253, %v2257
    %v2276 = vunpack.c.l.b16 %v2237
    %v2277 = vunpack.c.l.b16 %v2238
    %v2278 = vunpack.c.l.b16 %v2239
    %v2279 = vunpack.c.l.b16 %v2240
    %v2280 = vunpack.c.l.b16 %v2241
    %v2281 = vunpack.c.l.b16 %v2242
    %v2282 = vunpack.c.l.b16 %v2243
    %v2283 = vunpack.c.l.b16 %v2244
    %v2284 = vunpack.c.l.b16 %v2245
    %v2285 = vunpack.c.l.b16 %v2246
    %v2286 = vunpack.c.l.b16 %v2247
    %v2287 = vunpack.c.l.b16 %v2248
    %v2288 = vunpack.c.l.b16 %v2249
    %v2289 = vunpack.c.l.b16 %v2250
    %v2290 = vunpack.c.l.b16 %v2251
    %v2291 = vunpack.c.l.b16 %v2252
    %v2292 = vpack.c.b16 %v2277, %v2276
    %v2293 = vpack.c.b16 %v2279, %v2278
    %v2294 = vpack.c.b16 %v2281, %v2280
    %v2295 = vpack.c.b16 %v2283, %v2282
    %v2296 = vpack.c.b16 %v2285, %v2284
    %v2297 = vpack.c.b16 %v2287, %v2286
    %v2298 = vpack.c.b16 %v2289, %v2288
    %v2299 = vpack.c.b16 %v2291, %v2290
    %2308 = vmatprep.subr.bf16.mxu0 0
    %2309 = vmatpush1.bf16.msra.mxu0 %v2299
    %2310 = vmatprep.subr.bf16.mxu0 0
    %2311 = vmatpush1.bf16.msra.mxu0 %v2298
    %2312 = vmatprep.subr.bf16.mxu0 0
    %2313 = vmatpush1.bf16.msra.mxu0 %v2297
    %2314 = vmatprep.subr.bf16.mxu0 0
    %2315 = vmatpush1.bf16.msra.mxu0 %v2296
    %2316 = vmatprep.subr.bf16.mxu0 0
    %2317 = vmatpush1.bf16.msra.mxu0 %v2295
    %2318 = vmatprep.subr.bf16.mxu0 0
    %2319 = vmatpush1.bf16.msra.mxu0 %v2294
    %2320 = vmatprep.subr.bf16.mxu0 0
    %2321 = vmatpush1.bf16.msra.mxu0 %v2293
    %2322 = vmatprep.subr.bf16.mxu0 0
    %2323 = vmatpush1.bf16.msra.mxu0 %v2292
    %2324 = vmatprep.subr.bf16.mxu0 0
    %2325 = vmatpush2.bf16.msra.mxu0 0
    %2326 = vmatprep.subr.bf16.mxu0 0
    %2327 = vmatpush2.bf16.msra.mxu0 0
    %2328 = vmatprep.subr.bf16.mxu0 0
    %2329 = vmatpush2.bf16.msra.mxu0 0
    %2330 = vmatprep.subr.bf16.mxu0 0
    %2331 = vmatpush2.bf16.msra.mxu0 0
    %2332 = vmatprep.subr.bf16.mxu0 0
    %2333 = vmatpush2.bf16.msra.mxu0 0
    %2334 = vmatprep.subr.bf16.mxu0 0
    %2335 = vmatpush2.bf16.msra.mxu0 0
    %2336 = vmatprep.subr.bf16.mxu0 0
    %2337 = vmatpush2.bf16.msra.mxu0 0
    %2338 = vmatprep.subr.bf16.mxu0 0
    %2339 = vmatpush2.bf16.msra.mxu0 0
    %2340 = vmatprep.mubr.bf16.mxu0 0
    %2341 = vmatmul.mubr.bf16.gmra.mxu0 %v2236
    %v2342 = vpop.f32.mrf.mxu0
    %v2343 = vadd.f32 %v2258, %v2342
    %v2344 = vpop.f32.mrf.mxu0
    %v2345 = vpop.f32.mrf.mxu0
    %v2346 = vpop.f32.mrf.mxu0
    %2347 = vdwg.mxu0
    %2348 = vmax.xlane.f32.xlu0 %v2343
    %v2349 = vpop.xlane.xlu0 %2348
    %v2350 = vsub.f32 %v2343, %v2349
    %v2351 = vmul.f32 %v2350, 1.442695
    %v2352 = vpow.pop %v2351
    %2353 = vadd.xlane.f32.xlu0 %v2352
    %v2354 = vpop.xlane.xlu0 %2353
    %v2355 = vrcp.pop %v2354
    %v2356 = vmul.f32 %v2352, %v2355
    %2357 = vst [vmem:[#allocation15] sm:$0xff] %v2356
    %2358 = vst [vmem:[#allocation16] sm:$0xff] %v827
    %2359 = vst [vmem:[#allocation2] sm:$0xff] %v827
    // Predicated region
    $region74: #{tpu_custom_call.1} parent=1 // pred_check
      _
    $region75: #{tpu_custom_call.1} parent=1 // pred_check_branch
      %2361 = sbr.rel (0) target = $region77
    $region76: #{tpu_custom_call.1} parent=1 // pred_region
      %s2363 = ssub.s32 128, 128
      %2364 = vsyncadd [#allocation5], %s2363
      %s2366 = sshll.u32 [#allocation15], 4
      %s2367 = int_to_ptr.vmem [resolvable:$true] %s2366
      %2369 = dma.vmem_to_hbm [thread:$0]  %s2367, 128, %s10, [#allocation5]
    $region77: #{tpu_custom_call.1} parent=1 // pred_fallthru
      _
    // Predicated region
    $region78: #{tpu_custom_call.1} parent=1 // pred_check
      _
    $region79: #{tpu_custom_call.1} parent=1 // pred_check_branch
      %2371 = sbr.rel (0) target = $region81
    $region80: #{tpu_custom_call.1} parent=1 // pred_region
      %s2373 = ssub.s32 128, 128
      %2374 = vsyncadd [#allocation17], %s2373
      %s2376 = sshll.u32 [#allocation16], 4
      %s2377 = int_to_ptr.vmem [resolvable:$true] %s2376
      %2379 = dma.vmem_to_hbm [thread:$0]  %s2377, 128, %s11, [#allocation17]
    $region81: #{tpu_custom_call.1} parent=1 // pred_fallthru
      _
    // Predicated region
    $region82: #{tpu_custom_call.1} parent=1 // pred_check
      _
    $region83: #{tpu_custom_call.1} parent=1 // pred_check_branch
      %2381 = sbr.rel (0) target = $region85
    $region84: #{tpu_custom_call.1} parent=1 // pred_region
      %2382 = dma.done [#allocation5], 128
    $region85: #{tpu_custom_call.1} parent=1 // pred_fallthru
      _
    // Predicated region
    $region86: #{tpu_custom_call.1} parent=1 // pred_check
      _
    $region87: #{tpu_custom_call.1} parent=1 // pred_check_branch
      %2384 = sbr.rel (0) target = $region89
    $region88: #{tpu_custom_call.1} parent=1 // pred_region
      %2385 = dma.done [#allocation17], 128
    $region89: #{tpu_custom_call.1} parent=1 // pred_fallthru
      _
    %2386 = vsyncpa [#allocation4], 1
    %2387 = vsyncpa [#allocation7], 1
    %2388 = vsyncpa [#allocation10], 1
    %2389 = vsyncpa [#allocation13], 1
    %2390 = vsyncpa [#allocation5], 1
    %2391 = vsyncpa [#allocation17], 1

</llo_original>
